<compile_context>
chip_gen: v7x
topology: tpu7x:2x2x1
jax: 0.10.0
libtpu: 0.0.40
codegen_flags: <defaults>
</compile_context>

<pallas_src>
import functools

import jax
import jax.numpy as jnp
from jax import lax
from jax.experimental import pallas as pl
from jax.experimental.pallas import tpu as pltpu


def node_attention_kernel(x_ref, xbf_ref, wlt_ref, bl_ref, wrt_ref, br_ref,
                          src_ref, dst_ref, dst_row_ref, alpha_ref,
                          o_ref,
                          hcat_s, gmax_s, denom_s, numer_s,
                          *, slope, n_pad, e_tile, num_edges, has_pad):
    t = pl.program_id(1)                   # edge-tile index (sequential / "arbitrary")
    last_t = pl.num_programs(1) - 1

    # ---- once per feature-block: node-level projections + accumulator init ----
    @pl.when(t == 0)
    def _init():
        x = x_ref[...]                                                   # [N, D_full] f32
        hl = jnp.dot(x, wlt_ref[...], preferred_element_type=jnp.float32) + bl_ref[...]
        hr = jnp.dot(x, wrt_ref[...], preferred_element_type=jnp.float32) + br_ref[...]
        hcat_s[0:n_pad, :] = hl.astype(jnp.bfloat16)                     # [hl; hr] stacked
        hcat_s[n_pad:2 * n_pad, :] = hr.astype(jnp.bfloat16)
        gmax_s[...] = jnp.full_like(gmax_s, -1e30)
        denom_s[...] = jnp.zeros_like(denom_s)
        numer_s[...] = jnp.zeros_like(numer_s)

    # ---- gather hl[src] + hr[dst] with ONE fused bf16 one-hot matmul ----
    idx_s = src_ref[...]                                                 # [Et, 1] int32
    idx_d = dst_ref[...]                                                 # [Et, 1] int32
    pos2 = lax.broadcasted_iota(jnp.int32, (e_tile, 2 * n_pad), 1)
    oh_cat = jnp.logical_or(pos2 == idx_s,
                            pos2 == idx_d + n_pad).astype(jnp.bfloat16)  # [Et, 2N]
    h_sum = jnp.dot(oh_cat, hcat_s[...],
                    preferred_element_type=jnp.float32)                  # [Et, Db] f32

    # edge logits: e = LeakyReLU((hl[src] + hr[dst]) * alpha)
    e = h_sum * alpha_ref[...].astype(jnp.float32)
    e = jnp.where(e > 0, e, slope * e)

    if has_pad:   # static: only emitted when the last tile actually has padded edges
        eid = lax.broadcasted_iota(jnp.int32, (e_tile, 1), 0) + t * e_tile
        e = jnp.where(eid < num_edges, e, -1e30)   # padded edges -> -inf logits -> exp == 0

    # ---- online softmax: running per-column max, rescale accumulators when it grows ----
    m_old = gmax_s[...]                                                  # [1, Db]
    m_new = jnp.maximum(m_old, jnp.max(e, axis=0, keepdims=True))
    scale = jnp.exp(m_old - m_new)                                       # [1, Db]
    ex = jnp.exp(e - m_new)                                              # [Et, Db]

    # gather x[src]: reuse the left half of oh_cat as the source one-hot (bf16 MXU)
    s_oh = oh_cat[:, :n_pad]                                             # [Et, N]
    x_src = jnp.dot(s_oh, xbf_ref[...], preferred_element_type=jnp.float32)

    # scatter-add into per-dst accumulators (bf16 operands, f32 accumulate)
    d_oh_t = (lax.broadcasted_iota(jnp.int32, (n_pad, e_tile), 0)
              == dst_row_ref[...]).astype(jnp.bfloat16)                  # [N, Et]
    denom_s[...] = denom_s[...] * scale + jnp.dot(
        d_oh_t, ex.astype(jnp.bfloat16), preferred_element_type=jnp.float32)
    numer_s[...] = numer_s[...] * scale + jnp.dot(
        d_oh_t, (x_src * ex).astype(jnp.bfloat16), preferred_element_type=jnp.float32)
    gmax_s[...] = m_new

    # ---- finalize: out[v] = numer[v] / denom[v] (exactly 0 for zero-in-degree nodes) ----
    @pl.when(t == last_t)
    def _finalize():
        denom = denom_s[...]
        inv = pl.reciprocal(denom, approx=True)      # EUP reciprocal (off the VALU)
        inv = inv * (2.0 - denom * inv)              # one Newton step -> ~f32 accuracy
        o_ref[...] = jnp.where(denom > 0, numer_s[...] * inv, 0.0)


def _round_up(v, m):
    return ((v + m - 1) // m) * m


def _vmem_limit_bytes():
    # v5e/v6e: 128 MiB physical VMEM; v7x: 64 MiB.  Budget ~80% of what this chip has
    # (~100 MiB on v5e/v6e, ~51 MiB on v7x); unknown chip -> keep the compiler default.
    try:
        cap = pltpu.get_tpu_info().vmem_capacity_bytes
        return min(int(cap * 0.8), 110 * 1024 * 1024)
    except Exception:
        return None


def node_attention(x, Wl, bl, Wr, br, src, dst, alpha, slope, *, e_tile=None):
    """Pads to TPU-friendly shapes and launches the Pallas kernel. Returns [N, D] f32."""
    N, D = x.shape
    E = int(src.shape[0])
    if E == 0:
        return jnp.zeros((N, D), jnp.float32)

    n_pad = _round_up(N, 16)                       # 16: keeps bf16 packed-sublane tiles aligned
    d_pad = _round_up(D, 128)                      # lane-dense feature dimension

    # feature-column blocks: >=2 blocks when D allows, so v7x's two TensorCores both work
    if d_pad <= 128:
        d_block = d_pad
    elif d_pad % 256 == 0 and d_pad > 256:
        d_block = 256
    else:
        d_block = 128
    num_d_blocks = d_pad // d_block

    # edge tiles: default 1024 (review: >256 is fine; bound is the alpha double-buffer).
    e_cap = _round_up(E, 8)
    req = 1024 if e_tile is None else int(e_tile)
    e_tile = min(_round_up(max(req, 8), 8), e_cap)
    if e_tile < e_cap:
        # multiple tiles: the [1, e_tile] dst-row block puts e_tile on the lane axis,
        # so it must be a multiple of 128.
        e_tile = min(_round_up(e_tile, 128), e_cap)
    e_pad = _round_up(E, e_tile)
    num_tiles = e_pad // e_tile
    has_pad = (e_pad != E)

    f32, bf16, i32 = jnp.float32, jnp.bfloat16, jnp.int32
    x_p = jnp.zeros((n_pad, d_pad), f32).at[:N, :D].set(x.astype(f32))
    x_bf = x_p.astype(bf16)                        # bf16 operand for the x[src] gather matmul
    wlt_p = jnp.zeros((d_pad, d_pad), f32).at[:D, :D].set(jnp.asarray(Wl, f32).T)
    wrt_p = jnp.zeros((d_pad, d_pad), f32).at[:D, :D].set(jnp.asarray(Wr, f32).T)
    bl_p = jnp.zeros((1, d_pad), f32).at[0, :D].set(bl.astype(f32))
    br_p = jnp.zeros((1, d_pad), f32).at[0, :D].set(br.astype(f32))
    alpha_p = jnp.zeros((e_pad, d_pad), bf16).at[:E, :D].set(alpha.astype(bf16))  # bf16 stream
    src_p = jnp.zeros((e_pad, 1), i32).at[:E, 0].set(src.astype(i32))
    dst_p = jnp.zeros((e_pad, 1), i32).at[:E, 0].set(dst.astype(i32))
    dst_row = dst_p.reshape(1, e_pad)              # same indices, lane-major (scatter layout)

    kernel = functools.partial(node_attention_kernel, slope=float(slope), n_pad=n_pad,
                               e_tile=e_tile, num_edges=E, has_pad=has_pad)

    out = pl.pallas_call(
        kernel,
        out_shape=jax.ShapeDtypeStruct((n_pad, d_pad), f32),
        grid_spec=pltpu.PrefetchScalarGridSpec(
            num_scalar_prefetch=0,
            grid=(num_d_blocks, num_tiles),                        # (feature block, edge tile)
            in_specs=[
                pl.BlockSpec((n_pad, d_pad), lambda j, t: (0, 0)),    # x  (f32, K for proj)
                pl.BlockSpec((n_pad, d_block), lambda j, t: (0, j)),  # x  (bf16 gather operand)
                pl.BlockSpec((d_pad, d_block), lambda j, t: (0, j)),  # Wl^T (pre-transposed)
                pl.BlockSpec((1, d_block), lambda j, t: (0, j)),      # bl
                pl.BlockSpec((d_pad, d_block), lambda j, t: (0, j)),  # Wr^T
                pl.BlockSpec((1, d_block), lambda j, t: (0, j)),      # br
                pl.BlockSpec((e_tile, 1), lambda j, t: (t, 0)),       # src indices  [Et, 1]
                pl.BlockSpec((e_tile, 1), lambda j, t: (t, 0)),       # dst indices  [Et, 1]
                pl.BlockSpec((1, e_tile), lambda j, t: (0, t)),       # dst indices  [1, Et]
                pl.BlockSpec((e_tile, d_block), lambda j, t: (t, j)), # alpha (bf16 edge data)
            ],
            out_specs=pl.BlockSpec((n_pad, d_block), lambda j, t: (0, j)),
            scratch_shapes=[
                pltpu.VMEM((2 * n_pad, d_block), bf16),   # [Mu_l(x); Mu_r(x)] stacked, bf16
                pltpu.VMEM((1, d_block), f32),            # running per-column max
                pltpu.VMEM((n_pad, d_block), f32),        # per-dst softmax denominator
                pltpu.VMEM((n_pad, d_block), f32),        # per-dst weighted-message sum
            ],
        ),
        compiler_params=pltpu.CompilerParams(
            # feature blocks are independent -> parallel (v7x megacore);
            # edge-tile axis accumulates into shared scratch -> sequential.
            dimension_semantics=("parallel", "arbitrary"),
            vmem_limit_bytes=_vmem_limit_bytes(),
        ),
    )(x_p, x_bf, wlt_p, bl_p, wrt_p, br_p, src_p, dst_p, dst_row, alpha_p)
    return out[:N, :D]


def ref_forward(x, Wl, bl, Wr, br, src, dst, alpha, slope, num_nodes):
    """Pure-JAX reference of the PyTorch/DGL forward (segment ops)."""
    hl = x @ Wl.T + bl
    hr = x @ Wr.T + br
    e = jax.nn.leaky_relu((hl[src] + hr[dst]) * alpha, negative_slope=slope)
    node_max = jax.ops.segment_max(e, dst, num_segments=num_nodes)
    ex = jnp.exp(e - node_max[dst])
    denom = jax.ops.segment_sum(ex, dst, num_segments=num_nodes)
    attn = ex / denom[dst]
    return jax.ops.segment_sum(x[src] * attn, dst, num_segments=num_nodes)


if __name__ == "__main__":
    key = jax.random.PRNGKey(0)
    # small but structurally rich shapes: 20 nodes, 300 edges, feature dim 192
    #  -> 2 feature blocks (tests the parallel j axis / per-block re-init),
    #     3 edge tiles with padding in the last one (tests the online softmax + masking).
    N, E, in_dim = 20, 300, 192
    slope = 0.2

    k = jax.random.split(key, 8)
    bound = 1.0 / (in_dim ** 0.5)             # PyTorch nn.Linear default init range
    x = jax.random.normal(k[0], (N, in_dim), jnp.float32)
    Wl = jax.random.uniform(k[1], (in_dim, in_dim), jnp.float32, -bound, bound)
    bl = jax.random.uniform(k[2], (in_dim,), jnp.float32, -bound, bound)
    Wr = jax.random.uniform(k[3], (in_dim, in_dim), jnp.float32, -bound, bound)
    br = jax.random.uniform(k[4], (in_dim,), jnp.float32, -bound, bound)
    src = jax.random.randint(k[5], (E,), 0, N, dtype=jnp.int32)
    dst = jax.random.randint(k[6], (E,), 0, N, dtype=jnp.int32)
    alpha = jax.random.normal(k[7], (E, in_dim), jnp.float32)   # g.edata['alpha']

    out = node_attention(x, Wl, bl, Wr, br, src, dst, alpha, slope, e_tile=128)
    out = jax.block_until_ready(out)

    ref = ref_forward(x, Wl, bl, Wr, br, src, dst, alpha, slope, N)
    assert out.shape == (N, in_dim)
    # bf16 MXU operands (alpha / projections / x / attention weights, all ~2^-9 unit
    # roundoff, f32 accumulate) typically land within ~5e-3 of the f32 reference;
    # 2e-2 tolerance leaves margin while still catching any real indexing/softmax bug.
    err = float(jnp.max(jnp.abs(out - ref)))
    assert jnp.allclose(out, ref, atol=2e-2, rtol=2e-2), (
        f"Pallas kernel mismatch vs JAX reference (max abs err {err})")
    print("KERNEL_OK")
</pallas_src>

<mosaic_0001>
module attributes {stable_mosaic.version = 11 : i64} {
  func.func @node_attention_kernel(%arg0: i32, %arg1: i32, %arg2: memref<32x256xf32, #tpu.memory_space<vmem>>, %arg3: memref<32x128xbf16, #tpu.memory_space<vmem>>, %arg4: memref<256x128xf32, #tpu.memory_space<vmem>>, %arg5: memref<1x128xf32, #tpu.memory_space<vmem>>, %arg6: memref<256x128xf32, #tpu.memory_space<vmem>>, %arg7: memref<1x128xf32, #tpu.memory_space<vmem>>, %arg8: memref<128x1xi32, #tpu.memory_space<vmem>>, %arg9: memref<128x1xi32, #tpu.memory_space<vmem>>, %arg10: memref<1x128xi32, #tpu.memory_space<vmem>>, %arg11: memref<128x128xbf16, #tpu.memory_space<vmem>>, %arg12: memref<32x128xf32, #tpu.memory_space<vmem>>, %arg13: memref<64x128xbf16, #tpu.memory_space<vmem>>, %arg14: memref<1x128xf32, #tpu.memory_space<vmem>>, %arg15: memref<32x128xf32, #tpu.memory_space<vmem>>, %arg16: memref<32x128xf32, #tpu.memory_space<vmem>>) attributes {dimension_semantics = [#tpu.dimension_semantics<parallel>, #tpu.dimension_semantics<arbitrary>], iteration_bounds = array<i64: 2, 3>, scalar_prefetch = 0 : i64, scratch_operands = 4 : i64, tpu.core_type = #tpu.core_type<tc>, window_params = [{pipeline_mode = #tpu.pipeline_mode<synchronous>, transform_indices = @transform_0, window_bounds = array<i64: 32, 256>}, {transform_indices = @transform_1, window_bounds = array<i64: 32, 128>}, {transform_indices = @transform_2, window_bounds = array<i64: 256, 128>}, {transform_indices = @transform_3, window_bounds = array<i64: 1, 128>}, {transform_indices = @transform_4, window_bounds = array<i64: 256, 128>}, {transform_indices = @transform_5, window_bounds = array<i64: 1, 128>}, {transform_indices = @transform_6, window_bounds = array<i64: 128, 1>}, {transform_indices = @transform_7, window_bounds = array<i64: 128, 1>}, {transform_indices = @transform_8, window_bounds = array<i64: 1, 128>}, {transform_indices = @transform_9, window_bounds = array<i64: 128, 128>}, {transform_indices = @transform_10, window_bounds = array<i64: 32, 128>}]} {
    %c0_i32 = arith.constant 0 : i32
    %0 = arith.cmpi eq, %arg1, %c0_i32 : i32
    %1 = arith.extui %0 : i1 to i32
    %c0_i32_0 = arith.constant 0 : i32
    %2 = arith.cmpi ne, %1, %c0_i32_0 : i32
    scf.if %2 {
      %c0_32 = arith.constant 0 : index
      %c0_33 = arith.constant 0 : index
      %74 = vector.load %arg2[%c0_32, %c0_33] : memref<32x256xf32, #tpu.memory_space<vmem>>, vector<32x256xf32>
      %c0_34 = arith.constant 0 : index
      %c0_35 = arith.constant 0 : index
      %75 = vector.load %arg4[%c0_34, %c0_35] : memref<256x128xf32, #tpu.memory_space<vmem>>, vector<256x128xf32>
      %cst_36 = arith.constant dense<0.000000e+00> : vector<32x128xf32>
      %76 = tpu.matmul %74, %75, %cst_36 {dimension_numbers = #tpu.dot_dimension_numbers<[1], [0], [0], [1], [0, 0, 1, 1], [], []>} : vector<32x256xf32>, vector<256x128xf32>, vector<32x128xf32> -> vector<32x128xf32>
      %c0_37 = arith.constant 0 : index
      %c0_38 = arith.constant 0 : index
      %77 = vector.load %arg5[%c0_37, %c0_38] : memref<1x128xf32, #tpu.memory_space<vmem>>, vector<1x128xf32>
      %78 = vector.broadcast %77 : vector<1x128xf32> to vector<32x128xf32>
      %79 = arith.addf %76, %78 : vector<32x128xf32>
      %c0_39 = arith.constant 0 : index
      %c0_40 = arith.constant 0 : index
      %80 = vector.load %arg6[%c0_39, %c0_40] : memref<256x128xf32, #tpu.memory_space<vmem>>, vector<256x128xf32>
      %cst_41 = arith.constant dense<0.000000e+00> : vector<32x128xf32>
      %81 = tpu.matmul %74, %80, %cst_41 {dimension_numbers = #tpu.dot_dimension_numbers<[1], [0], [0], [1], [0, 0, 1, 1], [], []>} : vector<32x256xf32>, vector<256x128xf32>, vector<32x128xf32> -> vector<32x128xf32>
      %c0_42 = arith.constant 0 : index
      %c0_43 = arith.constant 0 : index
      %82 = vector.load %arg7[%c0_42, %c0_43] : memref<1x128xf32, #tpu.memory_space<vmem>>, vector<1x128xf32>
      %83 = vector.broadcast %82 : vector<1x128xf32> to vector<32x128xf32>
      %84 = arith.addf %81, %83 : vector<32x128xf32>
      %85 = arith.truncf %79 : vector<32x128xf32> to vector<32x128xbf16>
      %c0_44 = arith.constant 0 : index
      %c0_45 = arith.constant 0 : index
      %86 = vector.load %arg13[%c0_44, %c0_45] : memref<64x128xbf16, #tpu.memory_space<vmem>>, vector<32x128xbf16>
      tpu.vector_store %arg13[%c0_44, %c0_45], %85 {strides = array<i32>} : memref<64x128xbf16, #tpu.memory_space<vmem>>, vector<32x128xbf16>,
      %87 = arith.truncf %84 : vector<32x128xf32> to vector<32x128xbf16>
      %c32 = arith.constant 32 : index
      %c0_46 = arith.constant 0 : index
      %88 = vector.load %arg13[%c32, %c0_46] : memref<64x128xbf16, #tpu.memory_space<vmem>>, vector<32x128xbf16>
      tpu.vector_store %arg13[%c32, %c0_46], %87 {strides = array<i32>} : memref<64x128xbf16, #tpu.memory_space<vmem>>, vector<32x128xbf16>,
      %cst_47 = arith.constant -1.000000e+30 : f32
      %89 = vector.broadcast %cst_47 : f32 to vector<1x128xf32>
      %c0_48 = arith.constant 0 : index
      %c0_49 = arith.constant 0 : index
      %90 = vector.load %arg14[%c0_48, %c0_49] : memref<1x128xf32, #tpu.memory_space<vmem>>, vector<1x128xf32>
      tpu.vector_store %arg14[%c0_48, %c0_49], %89 {strides = array<i32>} : memref<1x128xf32, #tpu.memory_space<vmem>>, vector<1x128xf32>,
      %cst_50 = arith.constant 0.000000e+00 : f32
      %91 = vector.broadcast %cst_50 : f32 to vector<32x128xf32>
      %c0_51 = arith.constant 0 : index
      %c0_52 = arith.constant 0 : index
      %92 = vector.load %arg15[%c0_51, %c0_52] : memref<32x128xf32, #tpu.memory_space<vmem>>, vector<32x128xf32>
      tpu.vector_store %arg15[%c0_51, %c0_52], %91 {strides = array<i32>} : memref<32x128xf32, #tpu.memory_space<vmem>>, vector<32x128xf32>,
      %cst_53 = arith.constant 0.000000e+00 : f32
      %93 = vector.broadcast %cst_53 : f32 to vector<32x128xf32>
      %c0_54 = arith.constant 0 : index
      %c0_55 = arith.constant 0 : index
      %94 = vector.load %arg16[%c0_54, %c0_55] : memref<32x128xf32, #tpu.memory_space<vmem>>, vector<32x128xf32>
      tpu.vector_store %arg16[%c0_54, %c0_55], %93 {strides = array<i32>} : memref<32x128xf32, #tpu.memory_space<vmem>>, vector<32x128xf32>,
    } else {
    }
    %c0 = arith.constant 0 : index
    %c0_1 = arith.constant 0 : index
    %3 = vector.load %arg8[%c0, %c0_1] : memref<128x1xi32, #tpu.memory_space<vmem>>, vector<128x1xi32>
    %c0_2 = arith.constant 0 : index
    %c0_3 = arith.constant 0 : index
    %4 = vector.load %arg9[%c0_2, %c0_3] : memref<128x1xi32, #tpu.memory_space<vmem>>, vector<128x1xi32>
    %5 = tpu.iota {dimensions = array<i32: 1>} : vector<128x64xi32>
    %6 = vector.broadcast %3 : vector<128x1xi32> to vector<128x64xi32>
    %7 = arith.cmpi eq, %5, %6 : vector<128x64xi32>
    %c32_i32 = arith.constant 32 : i32
    %8 = vector.broadcast %c32_i32 : i32 to vector<128x1xi32>
    %9 = arith.addi %4, %8 : vector<128x1xi32>
    %10 = vector.broadcast %9 : vector<128x1xi32> to vector<128x64xi32>
    %11 = arith.cmpi eq, %5, %10 : vector<128x64xi32>
    %12 = arith.ori %7, %11 : vector<128x64xi1>
    %13 = arith.extui %12 : vector<128x64xi1> to vector<128x64xi32>
    %14 = arith.sitofp %13 : vector<128x64xi32> to vector<128x64xf32>
    %15 = arith.truncf %14 : vector<128x64xf32> to vector<128x64xbf16>
    %c0_4 = arith.constant 0 : index
    %c0_5 = arith.constant 0 : index
    %16 = vector.load %arg13[%c0_4, %c0_5] : memref<64x128xbf16, #tpu.memory_space<vmem>>, vector<64x128xbf16>
    %cst = arith.constant dense<0.000000e+00> : vector<128x128xf32>
    %17 = tpu.matmul %15, %16, %cst {dimension_numbers = #tpu.dot_dimension_numbers<[1], [0], [0], [1], [0, 0, 1, 1], [], []>} : vector<128x64xbf16>, vector<64x128xbf16>, vector<128x128xf32> -> vector<128x128xf32>
    %c0_6 = arith.constant 0 : index
    %c0_7 = arith.constant 0 : index
    %18 = vector.load %arg11[%c0_6, %c0_7] : memref<128x128xbf16, #tpu.memory_space<vmem>>, vector<128x128xbf16>
    %19 = arith.extf %18 : vector<128x128xbf16> to vector<128x128xf32>
    %20 = arith.mulf %17, %19 : vector<128x128xf32>
    %cst_8 = arith.constant 0.000000e+00 : f32
    %21 = vector.broadcast %cst_8 : f32 to vector<128x128xf32>
    %22 = arith.cmpf ogt, %20, %21 : vector<128x128xf32>
    %cst_9 = arith.constant 2.000000e-01 : f32
    %23 = vector.broadcast %cst_9 : f32 to vector<128x128xf32>
    %24 = arith.mulf %23, %20 : vector<128x128xf32>
    %25 = arith.select %22, %20, %24 : vector<128x128xi1>, vector<128x128xf32>
    %26 = tpu.iota {dimensions = array<i32: 0>} : vector<128x1xi32>
    %c128_i32 = arith.constant 128 : i32
    %27 = arith.muli %arg1, %c128_i32 : i32
    %28 = vector.broadcast %27 : i32 to vector<128x1xi32>
    %29 = arith.addi %26, %28 : vector<128x1xi32>
    %c300_i32 = arith.constant 300 : i32
    %30 = vector.broadcast %c300_i32 : i32 to vector<128x1xi32>
    %31 = arith.cmpi slt, %29, %30 : vector<128x1xi32>
    %cst_10 = arith.constant -1.000000e+30 : f32
    %32 = vector.shape_cast %31 : vector<128x1xi1> to vector<128x1xi1>
    %33 = vector.broadcast %32 : vector<128x1xi1> to vector<128x128xi1>
    %34 = vector.broadcast %cst_10 : f32 to vector<128x128xf32>
    %35 = arith.select %33, %25, %34 : vector<128x128xi1>, vector<128x128xf32>
    %c0_11 = arith.constant 0 : index
    %c0_12 = arith.constant 0 : index
    %36 = vector.load %arg14[%c0_11, %c0_12] : memref<1x128xf32, #tpu.memory_space<vmem>>, vector<1x128xf32>
    %cst_13 = arith.constant dense<0xFF800000> : vector<128xf32>
    %37 = vector.multi_reduction <maximumf>, %35, %cst_13 [0] : vector<128x128xf32> to vector<128xf32>
    %38 = vector.shape_cast %37 : vector<128xf32> to vector<1x128xf32>
    %39 = arith.maximumf %36, %38 : vector<1x128xf32>
    %40 = arith.subf %36, %39 : vector<1x128xf32>
    %41 = math.exp %40 : vector<1x128xf32>
    %42 = vector.broadcast %39 : vector<1x128xf32> to vector<128x128xf32>
    %43 = arith.subf %35, %42 : vector<128x128xf32>
    %44 = math.exp %43 : vector<128x128xf32>
    %45 = vector.extract_strided_slice %15 {offsets = [0, 0], sizes = [128, 32], strides = [1, 1]} : vector<128x64xbf16> to vector<128x32xbf16>
    %c0_14 = arith.constant 0 : index
    %c0_15 = arith.constant 0 : index
    %46 = vector.load %arg3[%c0_14, %c0_15] : memref<32x128xbf16, #tpu.memory_space<vmem>>, vector<32x128xbf16>
    %cst_16 = arith.constant dense<0.000000e+00> : vector<128x128xf32>
    %47 = tpu.matmul %45, %46, %cst_16 {dimension_numbers = #tpu.dot_dimension_numbers<[1], [0], [0], [1], [0, 0, 1, 1], [], []>} : vector<128x32xbf16>, vector<32x128xbf16>, vector<128x128xf32> -> vector<128x128xf32>
    %48 = tpu.iota {dimensions = array<i32: 0>} : vector<32x128xi32>
    %c0_17 = arith.constant 0 : index
    %c0_18 = arith.constant 0 : index
    %49 = vector.load %arg10[%c0_17, %c0_18] : memref<1x128xi32, #tpu.memory_space<vmem>>, vector<1x128xi32>
    %50 = vector.broadcast %49 : vector<1x128xi32> to vector<32x128xi32>
    %51 = arith.cmpi eq, %48, %50 : vector<32x128xi32>
    %52 = arith.extui %51 : vector<32x128xi1> to vector<32x128xi32>
    %53 = arith.sitofp %52 : vector<32x128xi32> to vector<32x128xf32>
    %54 = arith.truncf %53 : vector<32x128xf32> to vector<32x128xbf16>
    %c0_19 = arith.constant 0 : index
    %c0_20 = arith.constant 0 : index
    %55 = vector.load %arg15[%c0_19, %c0_20] : memref<32x128xf32, #tpu.memory_space<vmem>>, vector<32x128xf32>
    %56 = vector.broadcast %41 : vector<1x128xf32> to vector<32x128xf32>
    %57 = arith.mulf %55, %56 : vector<32x128xf32>
    %58 = arith.truncf %44 : vector<128x128xf32> to vector<128x128xbf16>
    %cst_21 = arith.constant dense<0.000000e+00> : vector<32x128xf32>
    %59 = tpu.matmul %54, %58, %cst_21 {dimension_numbers = #tpu.dot_dimension_numbers<[1], [0], [0], [1], [0, 0, 1, 1], [], []>} : vector<32x128xbf16>, vector<128x128xbf16>, vector<32x128xf32> -> vector<32x128xf32>
    %60 = arith.addf %57, %59 : vector<32x128xf32>
    %c0_22 = arith.constant 0 : index
    %c0_23 = arith.constant 0 : index
    %61 = vector.load %arg15[%c0_22, %c0_23] : memref<32x128xf32, #tpu.memory_space<vmem>>, vector<32x128xf32>
    tpu.vector_store %arg15[%c0_22, %c0_23], %60 {strides = array<i32>} : memref<32x128xf32, #tpu.memory_space<vmem>>, vector<32x128xf32>,
    %c0_24 = arith.constant 0 : index
    %c0_25 = arith.constant 0 : index
    %62 = vector.load %arg16[%c0_24, %c0_25] : memref<32x128xf32, #tpu.memory_space<vmem>>, vector<32x128xf32>
    %63 = vector.broadcast %41 : vector<1x128xf32> to vector<32x128xf32>
    %64 = arith.mulf %62, %63 : vector<32x128xf32>
    %65 = arith.mulf %47, %44 : vector<128x128xf32>
    %66 = arith.truncf %65 : vector<128x128xf32> to vector<128x128xbf16>
    %cst_26 = arith.constant dense<0.000000e+00> : vector<32x128xf32>
    %67 = tpu.matmul %54, %66, %cst_26 {dimension_numbers = #tpu.dot_dimension_numbers<[1], [0], [0], [1], [0, 0, 1, 1], [], []>} : vector<32x128xbf16>, vector<128x128xbf16>, vector<32x128xf32> -> vector<32x128xf32>
    %68 = arith.addf %64, %67 : vector<32x128xf32>
    %c0_27 = arith.constant 0 : index
    %c0_28 = arith.constant 0 : index
    %69 = vector.load %arg16[%c0_27, %c0_28] : memref<32x128xf32, #tpu.memory_space<vmem>>, vector<32x128xf32>
    tpu.vector_store %arg16[%c0_27, %c0_28], %68 {strides = array<i32>} : memref<32x128xf32, #tpu.memory_space<vmem>>, vector<32x128xf32>,
    %c0_29 = arith.constant 0 : index
    %c0_30 = arith.constant 0 : index
    %70 = vector.load %arg14[%c0_29, %c0_30] : memref<1x128xf32, #tpu.memory_space<vmem>>, vector<1x128xf32>
    tpu.vector_store %arg14[%c0_29, %c0_30], %39 {strides = array<i32>} : memref<1x128xf32, #tpu.memory_space<vmem>>, vector<1x128xf32>,
    %c2_i32 = arith.constant 2 : i32
    %71 = arith.cmpi eq, %arg1, %c2_i32 : i32
    %72 = arith.extui %71 : i1 to i32
    %c0_i32_31 = arith.constant 0 : i32
    %73 = arith.cmpi ne, %72, %c0_i32_31 : i32
    scf.if %73 {
      %c0_32 = arith.constant 0 : index
      %c0_33 = arith.constant 0 : index
      %74 = vector.load %arg15[%c0_32, %c0_33] : memref<32x128xf32, #tpu.memory_space<vmem>>, vector<32x128xf32>
      %75 = tpu.reciprocal %74 {approx = true} : vector<32x128xf32> -> vector<32x128xf32>
      %76 = arith.mulf %74, %75 : vector<32x128xf32>
      %cst_34 = arith.constant 2.000000e+00 : f32
      %77 = vector.broadcast %cst_34 : f32 to vector<32x128xf32>
      %78 = arith.subf %77, %76 : vector<32x128xf32>
      %79 = arith.mulf %75, %78 : vector<32x128xf32>
      %cst_35 = arith.constant 0.000000e+00 : f32
      %80 = vector.broadcast %cst_35 : f32 to vector<32x128xf32>
      %81 = arith.cmpf ogt, %74, %80 : vector<32x128xf32>
      %c0_36 = arith.constant 0 : index
      %c0_37 = arith.constant 0 : index
      %82 = vector.load %arg16[%c0_36, %c0_37] : memref<32x128xf32, #tpu.memory_space<vmem>>, vector<32x128xf32>
      %83 = arith.mulf %82, %79 : vector<32x128xf32>
      %cst_38 = arith.constant 0.000000e+00 : f32
      %84 = vector.broadcast %cst_38 : f32 to vector<32x128xf32>
      %85 = arith.select %81, %83, %84 : vector<32x128xi1>, vector<32x128xf32>
      %c0_39 = arith.constant 0 : index
      %c0_40 = arith.constant 0 : index
      %86 = vector.load %arg12[%c0_39, %c0_40] : memref<32x128xf32, #tpu.memory_space<vmem>>, vector<32x128xf32>
      tpu.vector_store %arg12[%c0_39, %c0_40], %85 {strides = array<i32>} : memref<32x128xf32, #tpu.memory_space<vmem>>, vector<32x128xf32>,
    } else {
    }
    return
  }
  func.func @transform_0(%arg0: i32, %arg1: i32) -> (i32, i32) {
    %c0_i32 = arith.constant 0 : i32
    %c0_i32_0 = arith.constant 0 : i32
    %c0_i32_1 = arith.constant 0 : i32
    return %c0_i32, %c0_i32_0 : i32, i32
  }
  func.func @transform_1(%arg0: i32, %arg1: i32) -> (i32, i32) {
    %c0_i32 = arith.constant 0 : i32
    %c0_i32_0 = arith.constant 0 : i32
    return %c0_i32, %arg0 : i32, i32
  }
  func.func @transform_2(%arg0: i32, %arg1: i32) -> (i32, i32) {
    %c0_i32 = arith.constant 0 : i32
    %c0_i32_0 = arith.constant 0 : i32
    return %c0_i32, %arg0 : i32, i32
  }
  func.func @transform_3(%arg0: i32, %arg1: i32) -> (i32, i32) {
    %c0_i32 = arith.constant 0 : i32
    %c0_i32_0 = arith.constant 0 : i32
    return %c0_i32, %arg0 : i32, i32
  }
  func.func @transform_4(%arg0: i32, %arg1: i32) -> (i32, i32) {
    %c0_i32 = arith.constant 0 : i32
    %c0_i32_0 = arith.constant 0 : i32
    return %c0_i32, %arg0 : i32, i32
  }
  func.func @transform_5(%arg0: i32, %arg1: i32) -> (i32, i32) {
    %c0_i32 = arith.constant 0 : i32
    %c0_i32_0 = arith.constant 0 : i32
    return %c0_i32, %arg0 : i32, i32
  }
  func.func @transform_6(%arg0: i32, %arg1: i32) -> (i32, i32) {
    %c0_i32 = arith.constant 0 : i32
    %c0_i32_0 = arith.constant 0 : i32
    return %arg1, %c0_i32 : i32, i32
  }
  func.func @transform_7(%arg0: i32, %arg1: i32) -> (i32, i32) {
    %c0_i32 = arith.constant 0 : i32
    %c0_i32_0 = arith.constant 0 : i32
    return %arg1, %c0_i32 : i32, i32
  }
  func.func @transform_8(%arg0: i32, %arg1: i32) -> (i32, i32) {
    %c0_i32 = arith.constant 0 : i32
    %c0_i32_0 = arith.constant 0 : i32
    return %c0_i32, %arg1 : i32, i32
  }
  func.func @transform_9(%arg0: i32, %arg1: i32) -> (i32, i32) {
    %c0_i32 = arith.constant 0 : i32
    return %arg1, %arg0 : i32, i32
  }
  func.func @transform_10(%arg0: i32, %arg1: i32) -> (i32, i32) {
    %c0_i32 = arith.constant 0 : i32
    %c0_i32_0 = arith.constant 0 : i32
    return %c0_i32, %arg0 : i32, i32
  }
}

</mosaic_0001>

<llo_original>
// kernel: tpu_custom_call.1
$region0: #{tpu_custom_call.1}
  #allocation0 [shape = 'u32[]', space=smem, size = 0x4, offset = 0x4, fixed_abs, tag = 'smem constant byte address 0x4 - core index']
  #allocation1 [shape = 'u32[144,128]{1,0:T(1,128)}', space=vmem, size = 0x12000, scoped, tag = 'internal scratch']
  #allocation2 [shape = 'bf16[64,128]{1,0:T(16,128)(2,1)}', space=vmem, size = 0x4000, scoped, tag = 'scratch operand']
  #allocation3 [shape = 'f32[1,128]{1,0:T(1,128)}', space=vmem, size = 0x200, scoped, tag = 'scratch operand']
  #allocation4 [shape = 'f32[32,128]{1,0:T(8,128)}', space=vmem, size = 0x4000, scoped, tag = 'scratch operand']
  #allocation5 [shape = 'f32[32,128]{1,0:T(8,128)}', space=vmem, size = 0x4000, scoped, tag = 'scratch operand']
  %s0 = inlined_call_operand.vmem [shape: f32[32,256], index: 0, kind: input, shape index: {}]
  %s1 = inlined_call_operand.vmem [shape: bf16[32,256], index: 1, kind: input, shape index: {}]
  %s2 = inlined_call_operand.vmem [shape: f32[256,256], index: 2, kind: input, shape index: {}]
  %s3 = inlined_call_operand.vmem [shape: f32[1,256], index: 3, kind: input, shape index: {}]
  %s4 = inlined_call_operand.hbm [shape: f32[256,256], index: 4, kind: input, shape index: {}]
  %s5 = inlined_call_operand.vmem [shape: f32[1,256], index: 5, kind: input, shape index: {}]
  %s6 = inlined_call_operand.vmem [shape: s32[384,1], index: 6, kind: input, shape index: {}]
  %s7 = inlined_call_operand.vmem [shape: s32[384,1], index: 7, kind: input, shape index: {}]
  %s8 = inlined_call_operand.vmem [shape: s32[1,384], index: 8, kind: input, shape index: {}]
  %s9 = inlined_call_operand.hbm [shape: bf16[384,256], index: 9, kind: input, shape index: {}]
  %s10 = inlined_call_operand.hbm [shape: f32[32,256], index: 10, kind: output, shape index: {}]
  %s11 = sld [smem:[#allocation0]]
  $region168: #{tpu_custom_call.1} parent=0
    _
  %s13 = ssub.s32 1, %s11
  %s14 = scalar_select 0, %s13, %s11
  $region1: #{tpu_custom_call.1} parent=0
    #allocation6 [shape = 'u8[16384]{0}', space=vmem, size = 0x4000, scoped, tag = 'input window, operand 1']
    #allocation7 [shape = 'u8[262144]{0}', space=vmem, size = 0x40000, scoped, tag = 'input window, operand 2']
    #allocation8 [shape = 'u8[262144]{0}', space=vmem, size = 0x40000, scoped, tag = 'input window, operand 4']
    #allocation9 [shape = 's32[2]{0}', space=sflag, size = 0x8, scoped, tag = 'scoped memory for tpu_custom_call.1']
    #allocation10 [shape = 's32[2]{0}', space=sflag, size = 0x8, scoped, tag = 'scoped memory for tpu_custom_call.1']
    #allocation11 [shape = 'u8[65536]{0}', space=vmem, size = 0x10000, scoped, tag = 'input window, operand 9']
    #allocation12 [shape = 's32[2]{0}', space=sflag, size = 0x8, scoped, tag = 'scoped memory for tpu_custom_call.1']
    #allocation13 [shape = 'u8[32768]{0}', space=vmem, size = 0x8000, scoped, tag = 'output window, operand 0']
    %15 = vsyncpa [#allocation9], 0
    %s16 = scalar_lea.sflag [#allocation9], 1
    %17 = vsyncpa %s16, 0
    %18 = vsyncpa [#allocation12], 0
    %s19 = scalar_lea.sflag [#allocation12], 1
    %20 = vsyncpa %s19, 0
    %21 = vsyncpa [#allocation10], 0
    %s22 = scalar_lea.sflag [#allocation10], 1
    %23 = vsyncpa %s22, 0
    loop: start=0, step=1, limit=8
    $region2: #{tpu_custom_call.1} parent=1 // loop_pre_header
      _
    $region3: #{tpu_custom_call.1} parent=1 // loop_header
      %s25 = sphi 0, %s29
      %p26 = scmp.ge.s32.totalorder %s25, 8
      %s32 = sphi 0, %s44
      %s33 = sphi 0, %s40
      %s34 = sphi 0, %s32
      %s35 = sphi 0, %s33
      %s36 = sphi 0, %s34
      %s37 = sphi 0, %s35
      %s45 = sphi 0, %s45
      %s47 = sphi 0, %s45
      %s48 = sphi 0, %s47
      %s62 = sphi 0, %s48
      %s68 = sphi 0, %s70
      %s71 = sphi 0, %s68
      %s72 = sphi 0, %s71
      %s88 = sphi 0, %s72
      %s94 = sphi 0, %s96
      %s97 = sphi 0, %s94
      %s98 = sphi 0, %s97
      %s114 = sphi 0, %s98
      %s120 = sphi 0, %s122
      %s123 = sphi 0, %s120
      %s124 = sphi 0, %s123
      %s140 = sphi 0, %s124
      %s146 = sphi 0, %s148
      %s149 = sphi 0, %s146
      %s150 = sphi 0, %s149
      %s166 = sphi 0, %s150
      %s172 = sphi 0, %s174
      %s175 = sphi 0, %s172
      %s176 = sphi 0, %s175
      %s192 = sphi 0, %s176
      %s198 = sphi 0, %s200
      %s201 = sphi 0, %s198
      %s202 = sphi 0, %s201
      %s218 = sphi 0, %s202
      %s224 = sphi 0, %s226
      %s227 = sphi 0, %s224
      %s228 = sphi 0, %s227
      %s244 = sphi 0, %s228
      %s250 = sphi 0, %s252
      %s253 = sphi 0, %s250
      %s254 = sphi 0, %s253
      %s270 = sphi 0, %s254
      %s278 = sphi 0, %s280
      %s281 = sphi 0, %s278
      %s282 = sphi 0, %s281
      %s298 = sphi 0, %s282
      %s304 = sphi 0, %s306
      %s307 = sphi 0, %s304
      %s308 = sphi 0, %s307
      %s324 = sphi 0, %s308
    $region4: #{tpu_custom_call.1} parent=1 // loop_header_branch
      %28 = sbr.rel (%p26) target = $region8
    $region5: #{tpu_custom_call.1} parent=1 // loop_body
      %s30 = ssub.s32 %s25, 1
      %s31 = ssub.s32 %s25, 2
      %s38 = sadd.s32 1, %s33
      %p39 = scmp.ge.s32.totalorder %s38, 3
      %s40 = scalar_select %p39, 0, %s38
      %s41 = sadd.s32 1, %s32
      %s42 = scalar_select %p39, %s41, %s32
      %p43 = scmp.ge.s32.totalorder %s42, 2
      %s44 = scalar_select %p43, 0, %s42
      %s46 = sadd.s32 %s45, 1
      %p49 = scmp.eq.s32.totalorder %s25, 5
      %p50 = scmp.ne.s32.totalorder %s45, %s47
      %p51 = scmp.eq.s32.totalorder %s25, 0
      %p52 = por %p50, %p51
      %p53 = scmp.ne.s32.totalorder %s45, %s47
      %p54 = scmp.eq.s32.totalorder %s30, 5
      %p55 = por %p53, %p54
      %p56 = scmp.ne.s32.totalorder %s47, %s48
      %p57 = scmp.eq.s32.totalorder %s30, 0
      %p58 = por %p56, %p57
      %p59 = scmp.ne.s32.totalorder %s47, %s48
      %p60 = scmp.eq.s32.totalorder %s31, 5
      %p61 = por %p59, %p60
      %p63 = scmp.ne.s32.totalorder %s48, %s62
      %p64 = scmp.eq.s32.totalorder %s31, 0
      %p65 = por %p63, %p64
      %s66 = ssub.s32 %s32, %s44
      %p67 = scmp.eq.s32.totalorder %s66, 0
      %s69 = sadd.s32 %s68, 1
      %s70 = scalar_select %p67, %s68, %s69
      %p73 = pneg %p67
      %p74 = scmp.eq.s32.totalorder %s25, 5
      %p75 = por %p73, %p74
      %p76 = scmp.ne.s32.totalorder %s68, %s71
      %p77 = scmp.eq.s32.totalorder %s25, 0
      %p78 = por %p76, %p77
      %p79 = scmp.ne.s32.totalorder %s68, %s71
      %p80 = scmp.eq.s32.totalorder %s30, 5
      %p81 = por %p79, %p80
      %p82 = scmp.ne.s32.totalorder %s71, %s72
      %p83 = scmp.eq.s32.totalorder %s30, 0
      %p84 = por %p82, %p83
      %p85 = scmp.ne.s32.totalorder %s71, %s72
      %p86 = scmp.eq.s32.totalorder %s31, 5
      %p87 = por %p85, %p86
      %p89 = scmp.ne.s32.totalorder %s72, %s88
      %p90 = scmp.eq.s32.totalorder %s31, 0
      %p91 = por %p89, %p90
      %s92 = ssub.s32 %s32, %s44
      %p93 = scmp.eq.s32.totalorder %s92, 0
      %s95 = sadd.s32 %s94, 1
      %s96 = scalar_select %p93, %s94, %s95
      %p99 = pneg %p93
      %p100 = scmp.eq.s32.totalorder %s25, 5
      %p101 = por %p99, %p100
      %p102 = scmp.ne.s32.totalorder %s94, %s97
      %p103 = scmp.eq.s32.totalorder %s25, 0
      %p104 = por %p102, %p103
      %p105 = scmp.ne.s32.totalorder %s94, %s97
      %p106 = scmp.eq.s32.totalorder %s30, 5
      %p107 = por %p105, %p106
      %p108 = scmp.ne.s32.totalorder %s97, %s98
      %p109 = scmp.eq.s32.totalorder %s30, 0
      %p110 = por %p108, %p109
      %p111 = scmp.ne.s32.totalorder %s97, %s98
      %p112 = scmp.eq.s32.totalorder %s31, 5
      %p113 = por %p111, %p112
      %p115 = scmp.ne.s32.totalorder %s98, %s114
      %p116 = scmp.eq.s32.totalorder %s31, 0
      %p117 = por %p115, %p116
      %s118 = ssub.s32 %s32, %s44
      %p119 = scmp.eq.s32.totalorder %s118, 0
      %s121 = sadd.s32 %s120, 1
      %s122 = scalar_select %p119, %s120, %s121
      %p125 = pneg %p119
      %p126 = scmp.eq.s32.totalorder %s25, 5
      %p127 = por %p125, %p126
      %p128 = scmp.ne.s32.totalorder %s120, %s123
      %p129 = scmp.eq.s32.totalorder %s25, 0
      %p130 = por %p128, %p129
      %p131 = scmp.ne.s32.totalorder %s120, %s123
      %p132 = scmp.eq.s32.totalorder %s30, 5
      %p133 = por %p131, %p132
      %p134 = scmp.ne.s32.totalorder %s123, %s124
      %p135 = scmp.eq.s32.totalorder %s30, 0
      %p136 = por %p134, %p135
      %p137 = scmp.ne.s32.totalorder %s123, %s124
      %p138 = scmp.eq.s32.totalorder %s31, 5
      %p139 = por %p137, %p138
      %p141 = scmp.ne.s32.totalorder %s124, %s140
      %p142 = scmp.eq.s32.totalorder %s31, 0
      %p143 = por %p141, %p142
      %s144 = ssub.s32 %s32, %s44
      %p145 = scmp.eq.s32.totalorder %s144, 0
      %s147 = sadd.s32 %s146, 1
      %s148 = scalar_select %p145, %s146, %s147
      %p151 = pneg %p145
      %p152 = scmp.eq.s32.totalorder %s25, 5
      %p153 = por %p151, %p152
      %p154 = scmp.ne.s32.totalorder %s146, %s149
      %p155 = scmp.eq.s32.totalorder %s25, 0
      %p156 = por %p154, %p155
      %p157 = scmp.ne.s32.totalorder %s146, %s149
      %p158 = scmp.eq.s32.totalorder %s30, 5
      %p159 = por %p157, %p158
      %p160 = scmp.ne.s32.totalorder %s149, %s150
      %p161 = scmp.eq.s32.totalorder %s30, 0
      %p162 = por %p160, %p161
      %p163 = scmp.ne.s32.totalorder %s149, %s150
      %p164 = scmp.eq.s32.totalorder %s31, 5
      %p165 = por %p163, %p164
      %p167 = scmp.ne.s32.totalorder %s150, %s166
      %p168 = scmp.eq.s32.totalorder %s31, 0
      %p169 = por %p167, %p168
      %s170 = ssub.s32 %s32, %s44
      %p171 = scmp.eq.s32.totalorder %s170, 0
      %s173 = sadd.s32 %s172, 1
      %s174 = scalar_select %p171, %s172, %s173
      %p177 = pneg %p171
      %p178 = scmp.eq.s32.totalorder %s25, 5
      %p179 = por %p177, %p178
      %p180 = scmp.ne.s32.totalorder %s172, %s175
      %p181 = scmp.eq.s32.totalorder %s25, 0
      %p182 = por %p180, %p181
      %p183 = scmp.ne.s32.totalorder %s172, %s175
      %p184 = scmp.eq.s32.totalorder %s30, 5
      %p185 = por %p183, %p184
      %p186 = scmp.ne.s32.totalorder %s175, %s176
      %p187 = scmp.eq.s32.totalorder %s30, 0
      %p188 = por %p186, %p187
      %p189 = scmp.ne.s32.totalorder %s175, %s176
      %p190 = scmp.eq.s32.totalorder %s31, 5
      %p191 = por %p189, %p190
      %p193 = scmp.ne.s32.totalorder %s176, %s192
      %p194 = scmp.eq.s32.totalorder %s31, 0
      %p195 = por %p193, %p194
      %s196 = ssub.s32 %s33, %s40
      %p197 = scmp.eq.s32.totalorder %s196, 0
      %s199 = sadd.s32 %s198, 1
      %s200 = scalar_select %p197, %s198, %s199
      %p203 = pneg %p197
      %p204 = scmp.eq.s32.totalorder %s25, 5
      %p205 = por %p203, %p204
      %p206 = scmp.ne.s32.totalorder %s198, %s201
      %p207 = scmp.eq.s32.totalorder %s25, 0
      %p208 = por %p206, %p207
      %p209 = scmp.ne.s32.totalorder %s198, %s201
      %p210 = scmp.eq.s32.totalorder %s30, 5
      %p211 = por %p209, %p210
      %p212 = scmp.ne.s32.totalorder %s201, %s202
      %p213 = scmp.eq.s32.totalorder %s30, 0
      %p214 = por %p212, %p213
      %p215 = scmp.ne.s32.totalorder %s201, %s202
      %p216 = scmp.eq.s32.totalorder %s31, 5
      %p217 = por %p215, %p216
      %p219 = scmp.ne.s32.totalorder %s202, %s218
      %p220 = scmp.eq.s32.totalorder %s31, 0
      %p221 = por %p219, %p220
      %s222 = ssub.s32 %s33, %s40
      %p223 = scmp.eq.s32.totalorder %s222, 0
      %s225 = sadd.s32 %s224, 1
      %s226 = scalar_select %p223, %s224, %s225
      %p229 = pneg %p223
      %p230 = scmp.eq.s32.totalorder %s25, 5
      %p231 = por %p229, %p230
      %p232 = scmp.ne.s32.totalorder %s224, %s227
      %p233 = scmp.eq.s32.totalorder %s25, 0
      %p234 = por %p232, %p233
      %p235 = scmp.ne.s32.totalorder %s224, %s227
      %p236 = scmp.eq.s32.totalorder %s30, 5
      %p237 = por %p235, %p236
      %p238 = scmp.ne.s32.totalorder %s227, %s228
      %p239 = scmp.eq.s32.totalorder %s30, 0
      %p240 = por %p238, %p239
      %p241 = scmp.ne.s32.totalorder %s227, %s228
      %p242 = scmp.eq.s32.totalorder %s31, 5
      %p243 = por %p241, %p242
      %p245 = scmp.ne.s32.totalorder %s228, %s244
      %p246 = scmp.eq.s32.totalorder %s31, 0
      %p247 = por %p245, %p246
      %s248 = ssub.s32 %s33, %s40
      %p249 = scmp.eq.s32.totalorder %s248, 0
      %s251 = sadd.s32 %s250, 1
      %s252 = scalar_select %p249, %s250, %s251
      %p255 = pneg %p249
      %p256 = scmp.eq.s32.totalorder %s25, 5
      %p257 = por %p255, %p256
      %p258 = scmp.ne.s32.totalorder %s250, %s253
      %p259 = scmp.eq.s32.totalorder %s25, 0
      %p260 = por %p258, %p259
      %p261 = scmp.ne.s32.totalorder %s250, %s253
      %p262 = scmp.eq.s32.totalorder %s30, 5
      %p263 = por %p261, %p262
      %p264 = scmp.ne.s32.totalorder %s253, %s254
      %p265 = scmp.eq.s32.totalorder %s30, 0
      %p266 = por %p264, %p265
      %p267 = scmp.ne.s32.totalorder %s253, %s254
      %p268 = scmp.eq.s32.totalorder %s31, 5
      %p269 = por %p267, %p268
      %p271 = scmp.ne.s32.totalorder %s254, %s270
      %p272 = scmp.eq.s32.totalorder %s31, 0
      %p273 = por %p271, %p272
      %s274 = ssub.s32 %s33, %s40
      %s275 = ssub.s32 %s32, %s44
      %s276 = sor.u32 %s274, %s275
      %p277 = scmp.eq.s32.totalorder %s276, 0
      %s279 = sadd.s32 %s278, 1
      %s280 = scalar_select %p277, %s278, %s279
      %p283 = pneg %p277
      %p284 = scmp.eq.s32.totalorder %s25, 5
      %p285 = por %p283, %p284
      %p286 = scmp.ne.s32.totalorder %s278, %s281
      %p287 = scmp.eq.s32.totalorder %s25, 0
      %p288 = por %p286, %p287
      %p289 = scmp.ne.s32.totalorder %s278, %s281
      %p290 = scmp.eq.s32.totalorder %s30, 5
      %p291 = por %p289, %p290
      %p292 = scmp.ne.s32.totalorder %s281, %s282
      %p293 = scmp.eq.s32.totalorder %s30, 0
      %p294 = por %p292, %p293
      %p295 = scmp.ne.s32.totalorder %s281, %s282
      %p296 = scmp.eq.s32.totalorder %s31, 5
      %p297 = por %p295, %p296
      %p299 = scmp.ne.s32.totalorder %s282, %s298
      %p300 = scmp.eq.s32.totalorder %s31, 0
      %p301 = por %p299, %p300
      %s302 = ssub.s32 %s32, %s44
      %p303 = scmp.eq.s32.totalorder %s302, 0
      %s305 = sadd.s32 %s304, 1
      %s306 = scalar_select %p303, %s304, %s305
      %p309 = pneg %p303
      %p310 = scmp.eq.s32.totalorder %s25, 5
      %p311 = por %p309, %p310
      %p312 = scmp.ne.s32.totalorder %s304, %s307
      %p313 = scmp.eq.s32.totalorder %s25, 0
      %p314 = por %p312, %p313
      %p315 = scmp.ne.s32.totalorder %s304, %s307
      %p316 = scmp.eq.s32.totalorder %s30, 5
      %p317 = por %p315, %p316
      %p318 = scmp.ne.s32.totalorder %s307, %s308
      %p319 = scmp.eq.s32.totalorder %s30, 0
      %p320 = por %p318, %p319
      %p321 = scmp.ne.s32.totalorder %s307, %s308
      %p322 = scmp.eq.s32.totalorder %s31, 5
      %p323 = por %p321, %p322
      %p325 = scmp.ne.s32.totalorder %s308, %s324
      %p326 = scmp.eq.s32.totalorder %s31, 0
      %p327 = por %p325, %p326
      %p328 = scmp.le.s32.totalorder 1, %s25
      %p329 = scmp.lt.s32.totalorder %s25, 7
      %p330 = pnand %p328, %p329
      %p331 = pneg %p330
      // Predicated region
      $region9: #{tpu_custom_call.1} parent=5 // pred_check
        _
      $region10: #{tpu_custom_call.1} parent=5 // pred_check_branch
        %333 = sbr.rel (%p330) target = $region12
      $region11: #{tpu_custom_call.1} parent=5 // pred_region
        %s334 = ssub.s32 %s25, 1
        // Predicated region
        $region13: #{tpu_custom_call.1} parent=11 // pred_check
          %p335 = pneg %p58
        $region14: #{tpu_custom_call.1} parent=11 // pred_check_branch
          %337 = sbr.rel (%p335) target = $region16
        $region15: #{tpu_custom_call.1} parent=11 // pred_region
          _
        $region16: #{tpu_custom_call.1} parent=11 // pred_fallthru
          _
      $region12: #{tpu_custom_call.1} parent=5 // pred_fallthru
        _
      %p338 = scmp.lt.s32.totalorder %s25, 6
      // Predicated region
      $region17: #{tpu_custom_call.1} parent=5 // pred_check
        %p339 = pneg %p338
      $region18: #{tpu_custom_call.1} parent=5 // pred_check_branch
        %341 = sbr.rel (%p339) target = $region20
      $region19: #{tpu_custom_call.1} parent=5 // pred_region
        // Predicated region
        $region21: #{tpu_custom_call.1} parent=19 // pred_check
          %p342 = pneg %p78
        $region22: #{tpu_custom_call.1} parent=19 // pred_check_branch
          %344 = sbr.rel (%p342) target = $region24
        $region23: #{tpu_custom_call.1} parent=19 // pred_region
          %s345 = sand.u32 %s68, 1
          %s346 = sand.u32 %s68, 1
          %s347 = smul.addr %s346, 16
          %s348 = scalar_lea.vmem [#allocation6], %s347
          %s349 = smul.addr %s32, 4
          %s350 = scalar_lea.vmem %s1, %s349
          // Predicated region
          $region25: #{tpu_custom_call.1} parent=23 // pred_check
            _
          $region26: #{tpu_custom_call.1} parent=23 // pred_check_branch
            %352 = sbr.rel (0) target = $region28
          $region27: #{tpu_custom_call.1} parent=23 // pred_region
            // Predicated region
            $region29: #{tpu_custom_call.1} parent=27 // pred_check
              _
            $region30: #{tpu_custom_call.1} parent=27 // pred_check_branch
              %354 = sbr.rel target = $region32
            $region31: #{tpu_custom_call.1} parent=27 // pred_region
              // Predicated region
              $region44: #{tpu_custom_call.1} parent=31 // pred_check
                _
              $region45: #{tpu_custom_call.1} parent=31 // pred_check_branch
                %375 = sbr.rel (0) target = $region47
              $region46: #{tpu_custom_call.1} parent=31 // pred_region
                loop: start=0, step=1, limit=1
                $region48: #{tpu_custom_call.1} parent=46 // loop_pre_header
                  _
                $region49: #{tpu_custom_call.1} parent=46 // loop_header
                  %s377 = sphi 0, %s381
                  %p378 = scmp.ge.s32.totalorder %s377, 1
                  %s382 = sphi %s350, %s350
                  %s383 = sphi %s348, %s348
                $region50: #{tpu_custom_call.1} parent=46 // loop_header_branch
                  %380 = sbr.rel (%p378) target = $region54
                $region51: #{tpu_custom_call.1} parent=46 // loop_body
                  _
                $region52: #{tpu_custom_call.1} parent=46 // loop_footer
                  %s381 = sadd.s32 1, %s377
                $region53: #{tpu_custom_call.1} parent=46 // loop_footer_branch
                  %376 = sbr.rel target = $region49
                $region54: #{tpu_custom_call.1} parent=46 // loop_exit
                  _
                loop: start=0, step=1, limit=1
                $region55: #{tpu_custom_call.1} parent=46 // loop_pre_header
                  _
                $region56: #{tpu_custom_call.1} parent=46 // loop_header
                  %s386 = sphi 0, %s390
                  %p387 = scmp.ge.s32.totalorder %s386, 1
                  %s391 = sphi %s350, %s350
                  %s392 = sphi %s348, %s348
                $region57: #{tpu_custom_call.1} parent=46 // loop_header_branch
                  %389 = sbr.rel (%p387) target = $region61
                $region58: #{tpu_custom_call.1} parent=46 // loop_body
                  %v393 = vld [vmem:[%s391] sm:$0xf]
                  %394 = vst [vmem:[%s392] sm:$0xf] %v393
                  %v395 = vld [vmem:[%s391 + $0x8] sm:$0xf]
                  %396 = vst [vmem:[%s392 + $0x4] sm:$0xf] %v395
                  %v397 = vld [vmem:[%s391 + $0x10] sm:$0xf]
                  %398 = vst [vmem:[%s392 + $0x8] sm:$0xf] %v397
                  %v399 = vld [vmem:[%s391 + $0x18] sm:$0xf]
                  %400 = vst [vmem:[%s392 + $0xc] sm:$0xf] %v399
                $region59: #{tpu_custom_call.1} parent=46 // loop_footer
                  %s390 = sadd.s32 1, %s386
                $region60: #{tpu_custom_call.1} parent=46 // loop_footer_branch
                  %385 = sbr.rel target = $region56
                $region61: #{tpu_custom_call.1} parent=46 // loop_exit
                  _
              $region47: #{tpu_custom_call.1} parent=31 // pred_fallthru
                _
            $region32: #{tpu_custom_call.1} parent=27 // pred_fallthru
              _
            // Predicated region
            $region33: #{tpu_custom_call.1} parent=27 // pred_check
              _
            $region34: #{tpu_custom_call.1} parent=27 // pred_check_branch
              %356 = sbr.rel (0) target = $region36
            $region35: #{tpu_custom_call.1} parent=27 // pred_region
              loop: start=0, step=1, limit=1
              $region37: #{tpu_custom_call.1} parent=35 // loop_pre_header
                _
              $region38: #{tpu_custom_call.1} parent=35 // loop_header
                %s359 = sphi 0, %s363
                %p360 = scmp.ge.s32.totalorder %s359, 1
                %s364 = sphi %s350, %s350
                %s365 = sphi %s348, %s348
              $region39: #{tpu_custom_call.1} parent=35 // loop_header_branch
                %362 = sbr.rel (%p360) target = $region43
              $region40: #{tpu_custom_call.1} parent=35 // loop_body
                %v366 = vld [vmem:[%s364] sm:$0xf]
                %367 = vst [vmem:[%s365] sm:$0xf] %v366
                %v368 = vld [vmem:[%s364 + $0x8] sm:$0xf]
                %369 = vst [vmem:[%s365 + $0x4] sm:$0xf] %v368
                %v370 = vld [vmem:[%s364 + $0x10] sm:$0xf]
                %371 = vst [vmem:[%s365 + $0x8] sm:$0xf] %v370
                %v372 = vld [vmem:[%s364 + $0x18] sm:$0xf]
                %373 = vst [vmem:[%s365 + $0xc] sm:$0xf] %v372
              $region41: #{tpu_custom_call.1} parent=35 // loop_footer
                %s363 = sadd.s32 1, %s359
              $region42: #{tpu_custom_call.1} parent=35 // loop_footer_branch
                %358 = sbr.rel target = $region38
              $region43: #{tpu_custom_call.1} parent=35 // loop_exit
                _
            $region36: #{tpu_custom_call.1} parent=27 // pred_fallthru
              _
          $region28: #{tpu_custom_call.1} parent=23 // pred_fallthru
            _
          %401 = vnop
        $region24: #{tpu_custom_call.1} parent=19 // pred_fallthru
          _
        // Predicated region
        $region62: #{tpu_custom_call.1} parent=19 // pred_check
          %p402 = pneg %p104
        $region63: #{tpu_custom_call.1} parent=19 // pred_check_branch
          %404 = sbr.rel (%p402) target = $region65
        $region64: #{tpu_custom_call.1} parent=19 // pred_region
          %s405 = sand.u32 %s94, 1
          %s406 = sand.u32 %s94, 1
          %s407 = smul.addr %s406, 256
          %s408 = scalar_lea.vmem [#allocation7], %s407
          %s409 = smul.addr %s32, 8
          %s410 = scalar_lea.vmem %s2, %s409
          // Predicated region
          $region66: #{tpu_custom_call.1} parent=64 // pred_check
            _
          $region67: #{tpu_custom_call.1} parent=64 // pred_check_branch
            %412 = sbr.rel (0) target = $region69
          $region68: #{tpu_custom_call.1} parent=64 // pred_region
            // Predicated region
            $region70: #{tpu_custom_call.1} parent=68 // pred_check
              _
            $region71: #{tpu_custom_call.1} parent=68 // pred_check_branch
              %414 = sbr.rel (0) target = $region73
            $region72: #{tpu_custom_call.1} parent=68 // pred_region
              // Predicated region
              $region85: #{tpu_custom_call.1} parent=72 // pred_check
                _
              $region86: #{tpu_custom_call.1} parent=72 // pred_check_branch
                %491 = sbr.rel (0) target = $region88
              $region87: #{tpu_custom_call.1} parent=72 // pred_region
                loop: start=0, step=1, limit=1
                $region89: #{tpu_custom_call.1} parent=87 // loop_pre_header
                  _
                $region90: #{tpu_custom_call.1} parent=87 // loop_header
                  %s493 = sphi 0, %s497
                  %p494 = scmp.ge.s32.totalorder %s493, 1
                  %s498 = sphi %s410, %s410
                  %s499 = sphi %s408, %s408
                $region91: #{tpu_custom_call.1} parent=87 // loop_header_branch
                  %496 = sbr.rel (%p494) target = $region95
                $region92: #{tpu_custom_call.1} parent=87 // loop_body
                  %v500 = vld [vmem:[%s498] sm:$0xff]
                  %501 = vst [vmem:[%s499] sm:$0xff] %v500
                  %v502 = vld [vmem:[%s498 + $0x10] sm:$0xff]
                  %503 = vst [vmem:[%s499 + $0x8] sm:$0xff] %v502
                  %v504 = vld [vmem:[%s498 + $0x20] sm:$0xff]
                  %505 = vst [vmem:[%s499 + $0x10] sm:$0xff] %v504
                  %v506 = vld [vmem:[%s498 + $0x30] sm:$0xff]
                  %507 = vst [vmem:[%s499 + $0x18] sm:$0xff] %v506
                  %v508 = vld [vmem:[%s498 + $0x40] sm:$0xff]
                  %509 = vst [vmem:[%s499 + $0x20] sm:$0xff] %v508
                  %v510 = vld [vmem:[%s498 + $0x50] sm:$0xff]
                  %511 = vst [vmem:[%s499 + $0x28] sm:$0xff] %v510
                  %v512 = vld [vmem:[%s498 + $0x60] sm:$0xff]
                  %513 = vst [vmem:[%s499 + $0x30] sm:$0xff] %v512
                  %v514 = vld [vmem:[%s498 + $0x70] sm:$0xff]
                  %515 = vst [vmem:[%s499 + $0x38] sm:$0xff] %v514
                  %v516 = vld [vmem:[%s498 + $0x80] sm:$0xff]
                  %517 = vst [vmem:[%s499 + $0x40] sm:$0xff] %v516
                  %v518 = vld [vmem:[%s498 + $0x90] sm:$0xff]
                  %519 = vst [vmem:[%s499 + $0x48] sm:$0xff] %v518
                  %v520 = vld [vmem:[%s498 + $0xa0] sm:$0xff]
                  %521 = vst [vmem:[%s499 + $0x50] sm:$0xff] %v520
                  %v522 = vld [vmem:[%s498 + $0xb0] sm:$0xff]
                  %523 = vst [vmem:[%s499 + $0x58] sm:$0xff] %v522
                  %v524 = vld [vmem:[%s498 + $0xc0] sm:$0xff]
                  %525 = vst [vmem:[%s499 + $0x60] sm:$0xff] %v524
                  %v526 = vld [vmem:[%s498 + $0xd0] sm:$0xff]
                  %527 = vst [vmem:[%s499 + $0x68] sm:$0xff] %v526
                  %v528 = vld [vmem:[%s498 + $0xe0] sm:$0xff]
                  %529 = vst [vmem:[%s499 + $0x70] sm:$0xff] %v528
                  %v530 = vld [vmem:[%s498 + $0xf0] sm:$0xff]
                  %531 = vst [vmem:[%s499 + $0x78] sm:$0xff] %v530
                  %v532 = vld [vmem:[%s498 + $0x100] sm:$0xff]
                  %533 = vst [vmem:[%s499 + $0x80] sm:$0xff] %v532
                  %v534 = vld [vmem:[%s498 + $0x110] sm:$0xff]
                  %535 = vst [vmem:[%s499 + $0x88] sm:$0xff] %v534
                  %v536 = vld [vmem:[%s498 + $0x120] sm:$0xff]
                  %537 = vst [vmem:[%s499 + $0x90] sm:$0xff] %v536
                  %v538 = vld [vmem:[%s498 + $0x130] sm:$0xff]
                  %539 = vst [vmem:[%s499 + $0x98] sm:$0xff] %v538
                  %v540 = vld [vmem:[%s498 + $0x140] sm:$0xff]
                  %541 = vst [vmem:[%s499 + $0xa0] sm:$0xff] %v540
                  %v542 = vld [vmem:[%s498 + $0x150] sm:$0xff]
                  %543 = vst [vmem:[%s499 + $0xa8] sm:$0xff] %v542
                  %v544 = vld [vmem:[%s498 + $0x160] sm:$0xff]
                  %545 = vst [vmem:[%s499 + $0xb0] sm:$0xff] %v544
                  %v546 = vld [vmem:[%s498 + $0x170] sm:$0xff]
                  %547 = vst [vmem:[%s499 + $0xb8] sm:$0xff] %v546
                  %v548 = vld [vmem:[%s498 + $0x180] sm:$0xff]
                  %549 = vst [vmem:[%s499 + $0xc0] sm:$0xff] %v548
                  %v550 = vld [vmem:[%s498 + $0x190] sm:$0xff]
                  %551 = vst [vmem:[%s499 + $0xc8] sm:$0xff] %v550
                  %v552 = vld [vmem:[%s498 + $0x1a0] sm:$0xff]
                  %553 = vst [vmem:[%s499 + $0xd0] sm:$0xff] %v552
                  %v554 = vld [vmem:[%s498 + $0x1b0] sm:$0xff]
                  %555 = vst [vmem:[%s499 + $0xd8] sm:$0xff] %v554
                  %v556 = vld [vmem:[%s498 + $0x1c0] sm:$0xff]
                  %557 = vst [vmem:[%s499 + $0xe0] sm:$0xff] %v556
                  %v558 = vld [vmem:[%s498 + $0x1d0] sm:$0xff]
                  %559 = vst [vmem:[%s499 + $0xe8] sm:$0xff] %v558
                  %v560 = vld [vmem:[%s498 + $0x1e0] sm:$0xff]
                  %561 = vst [vmem:[%s499 + $0xf0] sm:$0xff] %v560
                  %v562 = vld [vmem:[%s498 + $0x1f0] sm:$0xff]
                  %563 = vst [vmem:[%s499 + $0xf8] sm:$0xff] %v562
                $region93: #{tpu_custom_call.1} parent=87 // loop_footer
                  %s497 = sadd.s32 1, %s493
                $region94: #{tpu_custom_call.1} parent=87 // loop_footer_branch
                  %492 = sbr.rel target = $region90
                $region95: #{tpu_custom_call.1} parent=87 // loop_exit
                  _
              $region88: #{tpu_custom_call.1} parent=72 // pred_fallthru
                _
              // Predicated region
              $region96: #{tpu_custom_call.1} parent=72 // pred_check
                _
              $region97: #{tpu_custom_call.1} parent=72 // pred_check_branch
                %565 = sbr.rel target = $region99
              $region98: #{tpu_custom_call.1} parent=72 // pred_region
                _
              $region99: #{tpu_custom_call.1} parent=72 // pred_fallthru
                _
            $region73: #{tpu_custom_call.1} parent=68 // pred_fallthru
              _
            // Predicated region
            $region74: #{tpu_custom_call.1} parent=68 // pred_check
              _
            $region75: #{tpu_custom_call.1} parent=68 // pred_check_branch
              %416 = sbr.rel target = $region77
            $region76: #{tpu_custom_call.1} parent=68 // pred_region
              loop: start=0, step=1, limit=1
              $region78: #{tpu_custom_call.1} parent=76 // loop_pre_header
                _
              $region79: #{tpu_custom_call.1} parent=76 // loop_header
                %s419 = sphi 0, %s423
                %p420 = scmp.ge.s32.totalorder %s419, 1
                %s424 = sphi %s410, %s410
                %s425 = sphi %s408, %s408
              $region80: #{tpu_custom_call.1} parent=76 // loop_header_branch
                %422 = sbr.rel (%p420) target = $region84
              $region81: #{tpu_custom_call.1} parent=76 // loop_body
                %v426 = vld [vmem:[%s424] sm:$0xff]
                %427 = vst [vmem:[%s425] sm:$0xff] %v426
                %v428 = vld [vmem:[%s424 + $0x10] sm:$0xff]
                %429 = vst [vmem:[%s425 + $0x8] sm:$0xff] %v428
                %v430 = vld [vmem:[%s424 + $0x20] sm:$0xff]
                %431 = vst [vmem:[%s425 + $0x10] sm:$0xff] %v430
                %v432 = vld [vmem:[%s424 + $0x30] sm:$0xff]
                %433 = vst [vmem:[%s425 + $0x18] sm:$0xff] %v432
                %v434 = vld [vmem:[%s424 + $0x40] sm:$0xff]
                %435 = vst [vmem:[%s425 + $0x20] sm:$0xff] %v434
                %v436 = vld [vmem:[%s424 + $0x50] sm:$0xff]
                %437 = vst [vmem:[%s425 + $0x28] sm:$0xff] %v436
                %v438 = vld [vmem:[%s424 + $0x60] sm:$0xff]
                %439 = vst [vmem:[%s425 + $0x30] sm:$0xff] %v438
                %v440 = vld [vmem:[%s424 + $0x70] sm:$0xff]
                %441 = vst [vmem:[%s425 + $0x38] sm:$0xff] %v440
                %v442 = vld [vmem:[%s424 + $0x80] sm:$0xff]
                %443 = vst [vmem:[%s425 + $0x40] sm:$0xff] %v442
                %v444 = vld [vmem:[%s424 + $0x90] sm:$0xff]
                %445 = vst [vmem:[%s425 + $0x48] sm:$0xff] %v444
                %v446 = vld [vmem:[%s424 + $0xa0] sm:$0xff]
                %447 = vst [vmem:[%s425 + $0x50] sm:$0xff] %v446
                %v448 = vld [vmem:[%s424 + $0xb0] sm:$0xff]
                %449 = vst [vmem:[%s425 + $0x58] sm:$0xff] %v448
                %v450 = vld [vmem:[%s424 + $0xc0] sm:$0xff]
                %451 = vst [vmem:[%s425 + $0x60] sm:$0xff] %v450
                %v452 = vld [vmem:[%s424 + $0xd0] sm:$0xff]
                %453 = vst [vmem:[%s425 + $0x68] sm:$0xff] %v452
                %v454 = vld [vmem:[%s424 + $0xe0] sm:$0xff]
                %455 = vst [vmem:[%s425 + $0x70] sm:$0xff] %v454
                %v456 = vld [vmem:[%s424 + $0xf0] sm:$0xff]
                %457 = vst [vmem:[%s425 + $0x78] sm:$0xff] %v456
                %v458 = vld [vmem:[%s424 + $0x100] sm:$0xff]
                %459 = vst [vmem:[%s425 + $0x80] sm:$0xff] %v458
                %v460 = vld [vmem:[%s424 + $0x110] sm:$0xff]
                %461 = vst [vmem:[%s425 + $0x88] sm:$0xff] %v460
                %v462 = vld [vmem:[%s424 + $0x120] sm:$0xff]
                %463 = vst [vmem:[%s425 + $0x90] sm:$0xff] %v462
                %v464 = vld [vmem:[%s424 + $0x130] sm:$0xff]
                %465 = vst [vmem:[%s425 + $0x98] sm:$0xff] %v464
                %v466 = vld [vmem:[%s424 + $0x140] sm:$0xff]
                %467 = vst [vmem:[%s425 + $0xa0] sm:$0xff] %v466
                %v468 = vld [vmem:[%s424 + $0x150] sm:$0xff]
                %469 = vst [vmem:[%s425 + $0xa8] sm:$0xff] %v468
                %v470 = vld [vmem:[%s424 + $0x160] sm:$0xff]
                %471 = vst [vmem:[%s425 + $0xb0] sm:$0xff] %v470
                %v472 = vld [vmem:[%s424 + $0x170] sm:$0xff]
                %473 = vst [vmem:[%s425 + $0xb8] sm:$0xff] %v472
                %v474 = vld [vmem:[%s424 + $0x180] sm:$0xff]
                %475 = vst [vmem:[%s425 + $0xc0] sm:$0xff] %v474
                %v476 = vld [vmem:[%s424 + $0x190] sm:$0xff]
                %477 = vst [vmem:[%s425 + $0xc8] sm:$0xff] %v476
                %v478 = vld [vmem:[%s424 + $0x1a0] sm:$0xff]
                %479 = vst [vmem:[%s425 + $0xd0] sm:$0xff] %v478
                %v480 = vld [vmem:[%s424 + $0x1b0] sm:$0xff]
                %481 = vst [vmem:[%s425 + $0xd8] sm:$0xff] %v480
                %v482 = vld [vmem:[%s424 + $0x1c0] sm:$0xff]
                %483 = vst [vmem:[%s425 + $0xe0] sm:$0xff] %v482
                %v484 = vld [vmem:[%s424 + $0x1d0] sm:$0xff]
                %485 = vst [vmem:[%s425 + $0xe8] sm:$0xff] %v484
                %v486 = vld [vmem:[%s424 + $0x1e0] sm:$0xff]
                %487 = vst [vmem:[%s425 + $0xf0] sm:$0xff] %v486
                %v488 = vld [vmem:[%s424 + $0x1f0] sm:$0xff]
                %489 = vst [vmem:[%s425 + $0xf8] sm:$0xff] %v488
              $region82: #{tpu_custom_call.1} parent=76 // loop_footer
                %s423 = sadd.s32 1, %s419
              $region83: #{tpu_custom_call.1} parent=76 // loop_footer_branch
                %418 = sbr.rel target = $region79
              $region84: #{tpu_custom_call.1} parent=76 // loop_exit
                _
            $region77: #{tpu_custom_call.1} parent=68 // pred_fallthru
              _
          $region69: #{tpu_custom_call.1} parent=64 // pred_fallthru
            _
          %566 = vnop
        $region65: #{tpu_custom_call.1} parent=19 // pred_fallthru
          _
        // Predicated region
        $region100: #{tpu_custom_call.1} parent=19 // pred_check
          %p567 = pneg %p130
        $region101: #{tpu_custom_call.1} parent=19 // pred_check_branch
          %569 = sbr.rel (%p567) target = $region103
        $region102: #{tpu_custom_call.1} parent=19 // pred_region
          %p570 = scmp.lt.s32.totalorder %s32, 1
          %s571 = scalar_select %p570, %s32, 1
          %s572 = scalar_lea.vmem %s3, %s571
        $region103: #{tpu_custom_call.1} parent=19 // pred_fallthru
          _
        // Predicated region
        $region104: #{tpu_custom_call.1} parent=19 // pred_check
          %p573 = pneg %p156
        $region105: #{tpu_custom_call.1} parent=19 // pred_check_branch
          %575 = sbr.rel (%p573) target = $region107
        $region106: #{tpu_custom_call.1} parent=19 // pred_region
          %s576 = sand.u32 %s146, 1
          %s577 = scalar_lea.sflag [#allocation9], %s576
          %s578 = sand.u32 %s146, 1
          %s579 = smul.addr %s578, 256
          %s580 = scalar_lea.vmem [#allocation8], %s579
          %s582 = ssub.s32 4096, 4096
          %583 = vsyncadd %s577, %s582
          %s584 = smul.addr %s32, 128
          %s585 = scalar_lea.hbm %s4, %s584
          %s586 = sshll.u32 %s580, 4
          %s587 = int_to_ptr.vmem [resolvable:$true] %s586
          %592 = dma.hbm_to_vmem [thread:$0]  %s585, 4096, %s587, %s577, 256, 128, 8
        $region107: #{tpu_custom_call.1} parent=19 // pred_fallthru
          _
        // Predicated region
        $region108: #{tpu_custom_call.1} parent=19 // pred_check
          %p593 = pneg %p182
        $region109: #{tpu_custom_call.1} parent=19 // pred_check_branch
          %595 = sbr.rel (%p593) target = $region111
        $region110: #{tpu_custom_call.1} parent=19 // pred_region
          %p596 = scmp.lt.s32.totalorder %s32, 1
          %s597 = scalar_select %p596, %s32, 1
          %s598 = scalar_lea.vmem %s5, %s597
        $region111: #{tpu_custom_call.1} parent=19 // pred_fallthru
          _
        // Predicated region
        $region112: #{tpu_custom_call.1} parent=19 // pred_check
          %p599 = pneg %p208
        $region113: #{tpu_custom_call.1} parent=19 // pred_check_branch
          %601 = sbr.rel (%p599) target = $region115
        $region114: #{tpu_custom_call.1} parent=19 // pred_region
          %s602 = smul.u32 16, %s33
          %p603 = scmp.lt.s32.totalorder %s602, 47
          %s604 = scalar_select %p603, %s602, 47
          %s605 = smul.addr %s604, 8
          %s606 = scalar_lea.vmem %s6, %s605
          %s607 = smul.u32 16, %s33
        $region115: #{tpu_custom_call.1} parent=19 // pred_fallthru
          _
        // Predicated region
        $region116: #{tpu_custom_call.1} parent=19 // pred_check
          %p608 = pneg %p234
        $region117: #{tpu_custom_call.1} parent=19 // pred_check_branch
          %610 = sbr.rel (%p608) target = $region119
        $region118: #{tpu_custom_call.1} parent=19 // pred_region
          %s611 = smul.u32 16, %s33
          %p612 = scmp.lt.s32.totalorder %s611, 47
          %s613 = scalar_select %p612, %s611, 47
          %s614 = smul.addr %s613, 8
          %s615 = scalar_lea.vmem %s7, %s614
          %s616 = smul.u32 16, %s33
        $region119: #{tpu_custom_call.1} parent=19 // pred_fallthru
          _
        // Predicated region
        $region120: #{tpu_custom_call.1} parent=19 // pred_check
          %p617 = pneg %p260
        $region121: #{tpu_custom_call.1} parent=19 // pred_check_branch
          %619 = sbr.rel (%p617) target = $region123
        $region122: #{tpu_custom_call.1} parent=19 // pred_region
          %p620 = scmp.lt.s32.totalorder %s33, 2
          %s621 = scalar_select %p620, %s33, 2
          %s622 = scalar_lea.vmem %s8, %s621
        $region123: #{tpu_custom_call.1} parent=19 // pred_fallthru
          _
        // Predicated region
        $region124: #{tpu_custom_call.1} parent=19 // pred_check
          %p623 = pneg %p288
        $region125: #{tpu_custom_call.1} parent=19 // pred_check_branch
          %625 = sbr.rel (%p623) target = $region127
        $region126: #{tpu_custom_call.1} parent=19 // pred_region
          %s626 = sand.u32 %s278, 1
          %s627 = scalar_lea.sflag [#allocation12], %s626
          %s628 = sand.u32 %s278, 1
          %s629 = smul.addr %s628, 64
          %s630 = scalar_lea.vmem [#allocation11], %s629
          %s631 = smul.u32 16, %s33
          %s633 = ssub.s32 1024, 1024
          %634 = vsyncadd %s627, %s633
          %s635 = smul.addr %s631, 2
          %s636 = sadd.s32 %s32, %s635
          %s637 = smul.addr %s636, 64
          %s638 = scalar_lea.hbm %s9, %s637
          %s639 = sshll.u32 %s630, 4
          %s640 = int_to_ptr.vmem [resolvable:$true] %s639
          %645 = dma.hbm_to_vmem [thread:$0]  %s638, 1024, %s640, %s627, 128, 64, 4
        $region127: #{tpu_custom_call.1} parent=19 // pred_fallthru
          _
      $region20: #{tpu_custom_call.1} parent=5 // pred_fallthru
        _
      %p646 = scmp.le.s32.totalorder 1, %s25
      %p647 = scmp.lt.s32.totalorder %s25, 7
      %p648 = pnand %p646, %p647
      %p649 = pneg %p648
      // Predicated region
      $region128: #{tpu_custom_call.1} parent=5 // pred_check
        _
      $region129: #{tpu_custom_call.1} parent=5 // pred_check_branch
        %651 = sbr.rel (%p648) target = $region131
      $region130: #{tpu_custom_call.1} parent=5 // pred_region
        %s652 = ssub.s32 %s25, 1
        %s653 = sand.u32 %s71, 1
        %s654 = sand.u32 %s71, 1
        %s655 = smul.addr %s654, 16
        %s656 = scalar_lea.vmem [#allocation6], %s655
        // Predicated region
        $region132: #{tpu_custom_call.1} parent=130 // pred_check
          %p657 = pneg %p84
        $region133: #{tpu_custom_call.1} parent=130 // pred_check_branch
          %659 = sbr.rel (%p657) target = $region135
        $region134: #{tpu_custom_call.1} parent=130 // pred_region
          _
        $region135: #{tpu_custom_call.1} parent=130 // pred_fallthru
          _
        %s660 = sand.u32 %s97, 1
        %s661 = sand.u32 %s97, 1
        %s662 = smul.addr %s661, 256
        %s663 = scalar_lea.vmem [#allocation7], %s662
        // Predicated region
        $region136: #{tpu_custom_call.1} parent=130 // pred_check
          %p664 = pneg %p110
        $region137: #{tpu_custom_call.1} parent=130 // pred_check_branch
          %666 = sbr.rel (%p664) target = $region139
        $region138: #{tpu_custom_call.1} parent=130 // pred_region
          _
        $region139: #{tpu_custom_call.1} parent=130 // pred_fallthru
          _
        %s667 = sand.u32 %s149, 1
        %s668 = scalar_lea.sflag [#allocation9], %s667
        %s669 = sand.u32 %s149, 1
        %s670 = smul.addr %s669, 256
        %s671 = scalar_lea.vmem [#allocation8], %s670
        // Predicated region
        $region140: #{tpu_custom_call.1} parent=130 // pred_check
          %p672 = pneg %p162
        $region141: #{tpu_custom_call.1} parent=130 // pred_check_branch
          %674 = sbr.rel (%p672) target = $region143
        $region142: #{tpu_custom_call.1} parent=130 // pred_region
          %675 = dma.done %s668, 4096
        $region143: #{tpu_custom_call.1} parent=130 // pred_fallthru
          _
        %s676 = sand.u32 %s281, 1
        %s677 = scalar_lea.sflag [#allocation12], %s676
        %s678 = sand.u32 %s281, 1
        %s679 = smul.addr %s678, 64
        %s680 = scalar_lea.vmem [#allocation11], %s679
        // Predicated region
        $region144: #{tpu_custom_call.1} parent=130 // pred_check
          %p681 = pneg %p294
        $region145: #{tpu_custom_call.1} parent=130 // pred_check_branch
          %683 = sbr.rel (%p681) target = $region147
        $region146: #{tpu_custom_call.1} parent=130 // pred_region
          %684 = dma.done %s677, 1024
        $region147: #{tpu_custom_call.1} parent=130 // pred_fallthru
          _
        %p685 = pneg %p58
        %p686 = pneg %p55
        %s687 = sand.u32 %s71, 1
        %s688 = sand.u32 %s71, 1
        %s689 = smul.addr %s688, 16
        %s690 = scalar_lea.vmem [#allocation6], %s689
        %p691 = pneg %p84
        %p692 = pneg %p81
        %s693 = sand.u32 %s97, 1
        %s694 = sand.u32 %s97, 1
        %s695 = smul.addr %s694, 256
        %s696 = scalar_lea.vmem [#allocation7], %s695
        %p697 = pneg %p110
        %p698 = pneg %p107
        %p699 = scmp.lt.s32.totalorder %s34, 1
        %s700 = scalar_select %p699, %s34, 1
        %s701 = scalar_lea.vmem %s3, %s700
        %p702 = pneg %p136
        %p703 = pneg %p133
        %s704 = sand.u32 %s149, 1
        %s705 = scalar_lea.sflag [#allocation9], %s704
        %s706 = sand.u32 %s149, 1
        %s707 = smul.addr %s706, 256
        %s708 = scalar_lea.vmem [#allocation8], %s707
        %p709 = pneg %p162
        %p710 = pneg %p159
        %p711 = scmp.lt.s32.totalorder %s34, 1
        %s712 = scalar_select %p711, %s34, 1
        %s713 = scalar_lea.vmem %s5, %s712
        %p714 = pneg %p188
        %p715 = pneg %p185
        %s716 = smul.u32 16, %s35
        %p717 = scmp.lt.s32.totalorder %s716, 47
        %s718 = scalar_select %p717, %s716, 47
        %s719 = smul.addr %s718, 8
        %s720 = scalar_lea.vmem %s6, %s719
        %p721 = pneg %p214
        %p722 = pneg %p211
        %s723 = smul.u32 16, %s35
        %p724 = scmp.lt.s32.totalorder %s723, 47
        %s725 = scalar_select %p724, %s723, 47
        %s726 = smul.addr %s725, 8
        %s727 = scalar_lea.vmem %s7, %s726
        %p728 = pneg %p240
        %p729 = pneg %p237
        %p730 = scmp.lt.s32.totalorder %s35, 2
        %s731 = scalar_select %p730, %s35, 2
        %s732 = scalar_lea.vmem %s8, %s731
        %p733 = pneg %p266
        %p734 = pneg %p263
        %s735 = sand.u32 %s281, 1
        %s736 = scalar_lea.sflag [#allocation12], %s735
        %s737 = sand.u32 %s281, 1
        %s738 = smul.addr %s737, 64
        %s739 = scalar_lea.vmem [#allocation11], %s738
        %p740 = pneg %p294
        %p741 = pneg %p291
        %p742 = pneg %p320
        %p743 = pneg %p317
        %s744 = sand.u32 %s307, 1
        %s745 = scalar_lea.sflag [#allocation10], %s744
        %s746 = sand.u32 %s307, 1
        %s747 = smul.addr %s746, 32
        %s748 = scalar_lea.vmem [#allocation13], %s747
        %p749 = scmp.lt.s32.totalorder %s34, 1
        %s750 = scalar_select %p749, %s34, 1
        %s751 = scalar_lea.vmem %s3, %s750
        %p752 = scmp.lt.s32.totalorder %s34, 1
        %s753 = scalar_select %p752, %s34, 1
        %s754 = scalar_lea.vmem %s5, %s753
        %s755 = smul.u32 16, %s35
        %p756 = scmp.lt.s32.totalorder %s755, 47
        %s757 = scalar_select %p756, %s755, 47
        %s758 = smul.addr %s757, 8
        %s759 = scalar_lea.vmem %s6, %s758
        %s760 = smul.u32 16, %s35
        %s761 = smul.u32 16, %s35
        %p762 = scmp.lt.s32.totalorder %s761, 47
        %s763 = scalar_select %p762, %s761, 47
        %s764 = smul.addr %s763, 8
        %s765 = scalar_lea.vmem %s7, %s764
        %s766 = smul.u32 16, %s35
        %p767 = scmp.lt.s32.totalorder %s35, 2
        %s768 = scalar_select %p767, %s35, 2
        %s769 = scalar_lea.vmem %s8, %s768
        %s770 = smul.u32 16, %s35
        %p772 = scmp.eq.s32.totalorder %s35, 0
        // Predicated region
        $region148: #{tpu_custom_call.1} parent=130 // pred_check
          %p773 = pneg %p772
        $region149: #{tpu_custom_call.1} parent=130 // pred_check_branch
          %775 = sbr.rel (%p773) target = $region151
        $region150: #{tpu_custom_call.1} parent=130 // pred_region
          %v776 = vld [vmem:[%s0] sm:$0xff]
          %v777 = vld [vmem:[%s0 + $0x8] sm:$0xff]
          %v778 = vld [vmem:[%s0 + $0x10] sm:$0xff]
          %v779 = vld [vmem:[%s0 + $0x18] sm:$0xff]
          %v780 = vld [vmem:[%s0 + $0x20] sm:$0xff]
          %v781 = vld [vmem:[%s0 + $0x28] sm:$0xff]
          %v782 = vld [vmem:[%s0 + $0x30] sm:$0xff]
          %v783 = vld [vmem:[%s0 + $0x38] sm:$0xff]
          %v784 = vld [vmem:[%s663] sm:$0xff]
          %v785 = vld [vmem:[%s663 + $0x8] sm:$0xff]
          %v786 = vld [vmem:[%s663 + $0x10] sm:$0xff]
          %v787 = vld [vmem:[%s663 + $0x18] sm:$0xff]
          %v788 = vld [vmem:[%s663 + $0x20] sm:$0xff]
          %v789 = vld [vmem:[%s663 + $0x28] sm:$0xff]
          %v790 = vld [vmem:[%s663 + $0x30] sm:$0xff]
          %v791 = vld [vmem:[%s663 + $0x38] sm:$0xff]
          %v792 = vld [vmem:[%s663 + $0x40] sm:$0xff]
          %v793 = vld [vmem:[%s663 + $0x48] sm:$0xff]
          %v794 = vld [vmem:[%s663 + $0x50] sm:$0xff]
          %v795 = vld [vmem:[%s663 + $0x58] sm:$0xff]
          %v796 = vld [vmem:[%s663 + $0x60] sm:$0xff]
          %v797 = vld [vmem:[%s663 + $0x68] sm:$0xff]
          %v798 = vld [vmem:[%s663 + $0x70] sm:$0xff]
          %v799 = vld [vmem:[%s663 + $0x78] sm:$0xff]
          %v800 = vld [vmem:[%s663 + $0x80] sm:$0xff]
          %v801 = vld [vmem:[%s663 + $0x88] sm:$0xff]
          %v802 = vld [vmem:[%s663 + $0x90] sm:$0xff]
          %v803 = vld [vmem:[%s663 + $0x98] sm:$0xff]
          %v804 = vld [vmem:[%s663 + $0xa0] sm:$0xff]
          %v805 = vld [vmem:[%s663 + $0xa8] sm:$0xff]
          %v806 = vld [vmem:[%s663 + $0xb0] sm:$0xff]
          %v807 = vld [vmem:[%s663 + $0xb8] sm:$0xff]
          %v808 = vld [vmem:[%s663 + $0xc0] sm:$0xff]
          %v809 = vld [vmem:[%s663 + $0xc8] sm:$0xff]
          %v810 = vld [vmem:[%s663 + $0xd0] sm:$0xff]
          %v811 = vld [vmem:[%s663 + $0xd8] sm:$0xff]
          %v812 = vld [vmem:[%s663 + $0xe0] sm:$0xff]
          %v813 = vld [vmem:[%s663 + $0xe8] sm:$0xff]
          %v814 = vld [vmem:[%s663 + $0xf0] sm:$0xff]
          %v815 = vld [vmem:[%s663 + $0xf8] sm:$0xff]
          %v816 = vld [vmem:[%s751] sm:$0x1]
          %v818 = vlaneseq
          %v819 = vshrl.u32 %v818, 7
          %v820 = vsub.s32 0, %v819
          %v821 = vrot.slane %v816, %v820
          %823 = vmatprep.subr.mxu0 0.0
          %824 = vmatpush1.msra.mxu0 %v784
          %825 = vmatprep.subr.mxu0 0.0
          %826 = vmatpush1.msra.mxu0 %v785
          %827 = vmatprep.subr.mxu0 0.0
          %828 = vmatpush1.msra.mxu0 %v786
          %829 = vmatprep.subr.mxu0 0.0
          %830 = vmatpush1.msra.mxu0 %v787
          %831 = vmatprep.subr.mxu0 0.0
          %832 = vmatpush1.msra.mxu0 %v788
          %833 = vmatprep.subr.mxu0 0.0
          %834 = vmatpush1.msra.mxu0 %v789
          %835 = vmatprep.subr.mxu0 0.0
          %836 = vmatpush1.msra.mxu0 %v790
          %837 = vmatprep.subr.mxu0 0.0
          %838 = vmatpush1.msra.mxu0 %v791
          %839 = vmatprep.subr.mxu0 0.0
          %840 = vmatpush1.msra.mxu0 %v792
          %841 = vmatprep.subr.mxu0 0.0
          %842 = vmatpush1.msra.mxu0 %v793
          %843 = vmatprep.subr.mxu0 0.0
          %844 = vmatpush1.msra.mxu0 %v794
          %845 = vmatprep.subr.mxu0 0.0
          %846 = vmatpush1.msra.mxu0 %v795
          %847 = vmatprep.subr.mxu0 0.0
          %848 = vmatpush1.msra.mxu0 %v796
          %849 = vmatprep.subr.mxu0 0.0
          %850 = vmatpush1.msra.mxu0 %v797
          %851 = vmatprep.subr.mxu0 0.0
          %852 = vmatpush1.msra.mxu0 %v798
          %853 = vmatprep.subr.mxu0 0.0
          %854 = vmatpush1.msra.mxu0 %v799
          %855 = vmatprep.subr.mxu0 0.0
          %856 = vmatpush1.msra.mxu0 %v800
          %857 = vmatprep.subr.mxu0 0.0
          %858 = vmatpush1.msra.mxu0 %v801
          %859 = vmatprep.subr.mxu0 0.0
          %860 = vmatpush1.msra.mxu0 %v802
          %861 = vmatprep.subr.mxu0 0.0
          %862 = vmatpush1.msra.mxu0 %v803
          %863 = vmatprep.subr.mxu0 0.0
          %864 = vmatpush1.msra.mxu0 %v804
          %865 = vmatprep.subr.mxu0 0.0
          %866 = vmatpush1.msra.mxu0 %v805
          %867 = vmatprep.subr.mxu0 0.0
          %868 = vmatpush1.msra.mxu0 %v806
          %869 = vmatprep.subr.mxu0 0.0
          %870 = vmatpush1.msra.mxu0 %v807
          %871 = vmatprep.subr.mxu0 0.0
          %872 = vmatpush1.msra.mxu0 %v808
          %873 = vmatprep.subr.mxu0 0.0
          %874 = vmatpush1.msra.mxu0 %v809
          %875 = vmatprep.subr.mxu0 0.0
          %876 = vmatpush1.msra.mxu0 %v810
          %877 = vmatprep.subr.mxu0 0.0
          %878 = vmatpush1.msra.mxu0 %v811
          %879 = vmatprep.subr.mxu0 0.0
          %880 = vmatpush1.msra.mxu0 %v812
          %881 = vmatprep.subr.mxu0 0.0
          %882 = vmatpush1.msra.mxu0 %v813
          %883 = vmatprep.subr.mxu0 0.0
          %884 = vmatpush1.msra.mxu0 %v814
          %885 = vmatprep.subr.mxu0 0.0
          %886 = vmatpush1.msra.mxu0 %v815
          %887 = vmatprep.mubr.f32.mxu0 %v777
          %888 = vmatmul.mubr.f32.gmra.mrb[0].mxu0 %v776
          %v889 = vpop.f32.mrb[0].mxu0
          %v890 = vadd.f32 %v821, %v889
          %v891 = vpop.f32.mrb[0].mxu0
          %892 = vmatprep.mubr.f32.mxu0 %v779
          %893 = vmatmul.mubr.f32.gmra.mrb[0].mxu0 %v778
          %v894 = vpop.f32.mrb[0].mxu0
          %v895 = vadd.f32 %v821, %v894
          %v896 = vpop.f32.mrb[0].mxu0
          %897 = vmatprep.mubr.f32.mxu0 %v781
          %898 = vmatmul.mubr.f32.gmra.mrb[0].mxu0 %v780
          %v899 = vpop.f32.mrb[0].mxu0
          %v900 = vadd.f32 %v821, %v899
          %v901 = vpop.f32.mrb[0].mxu0
          %902 = vmatprep.mubr.f32.mxu0 %v783
          %903 = vmatmul.mubr.f32.gmra.mrb[0].mxu0 %v782
          %v904 = vpop.f32.mrb[0].mxu0
          %v905 = vadd.f32 %v821, %v904
          %v906 = vpop.f32.mrb[0].mxu0
          %907 = vdwg.mxu0
          %v908 = vld [vmem:[%s671] sm:$0xff]
          %v909 = vld [vmem:[%s671 + $0x8] sm:$0xff]
          %v910 = vld [vmem:[%s671 + $0x10] sm:$0xff]
          %v911 = vld [vmem:[%s671 + $0x18] sm:$0xff]
          %v912 = vld [vmem:[%s671 + $0x20] sm:$0xff]
          %v913 = vld [vmem:[%s671 + $0x28] sm:$0xff]
          %v914 = vld [vmem:[%s671 + $0x30] sm:$0xff]
          %v915 = vld [vmem:[%s671 + $0x38] sm:$0xff]
          %v916 = vld [vmem:[%s671 + $0x40] sm:$0xff]
          %v917 = vld [vmem:[%s671 + $0x48] sm:$0xff]
          %v918 = vld [vmem:[%s671 + $0x50] sm:$0xff]
          %v919 = vld [vmem:[%s671 + $0x58] sm:$0xff]
          %v920 = vld [vmem:[%s671 + $0x60] sm:$0xff]
          %v921 = vld [vmem:[%s671 + $0x68] sm:$0xff]
          %v922 = vld [vmem:[%s671 + $0x70] sm:$0xff]
          %v923 = vld [vmem:[%s671 + $0x78] sm:$0xff]
          %v924 = vld [vmem:[%s671 + $0x80] sm:$0xff]
          %v925 = vld [vmem:[%s671 + $0x88] sm:$0xff]
          %v926 = vld [vmem:[%s671 + $0x90] sm:$0xff]
          %v927 = vld [vmem:[%s671 + $0x98] sm:$0xff]
          %v928 = vld [vmem:[%s671 + $0xa0] sm:$0xff]
          %v929 = vld [vmem:[%s671 + $0xa8] sm:$0xff]
          %v930 = vld [vmem:[%s671 + $0xb0] sm:$0xff]
          %v931 = vld [vmem:[%s671 + $0xb8] sm:$0xff]
          %v932 = vld [vmem:[%s671 + $0xc0] sm:$0xff]
          %v933 = vld [vmem:[%s671 + $0xc8] sm:$0xff]
          %v934 = vld [vmem:[%s671 + $0xd0] sm:$0xff]
          %v935 = vld [vmem:[%s671 + $0xd8] sm:$0xff]
          %v936 = vld [vmem:[%s671 + $0xe0] sm:$0xff]
          %v937 = vld [vmem:[%s671 + $0xe8] sm:$0xff]
          %v938 = vld [vmem:[%s671 + $0xf0] sm:$0xff]
          %v939 = vld [vmem:[%s671 + $0xf8] sm:$0xff]
          %v940 = vld [vmem:[%s754] sm:$0x1]
          %v942 = vlaneseq
          %v943 = vshrl.u32 %v942, 7
          %v944 = vsub.s32 0, %v943
          %v945 = vrot.slane %v940, %v944
          %947 = vmatprep.subr.mxu0 0.0
          %948 = vmatpush1.msra.mxu0 %v908
          %949 = vmatprep.subr.mxu0 0.0
          %950 = vmatpush1.msra.mxu0 %v909
          %951 = vmatprep.subr.mxu0 0.0
          %952 = vmatpush1.msra.mxu0 %v910
          %953 = vmatprep.subr.mxu0 0.0
          %954 = vmatpush1.msra.mxu0 %v911
          %955 = vmatprep.subr.mxu0 0.0
          %956 = vmatpush1.msra.mxu0 %v912
          %957 = vmatprep.subr.mxu0 0.0
          %958 = vmatpush1.msra.mxu0 %v913
          %959 = vmatprep.subr.mxu0 0.0
          %960 = vmatpush1.msra.mxu0 %v914
          %961 = vmatprep.subr.mxu0 0.0
          %962 = vmatpush1.msra.mxu0 %v915
          %963 = vmatprep.subr.mxu0 0.0
          %964 = vmatpush1.msra.mxu0 %v916
          %965 = vmatprep.subr.mxu0 0.0
          %966 = vmatpush1.msra.mxu0 %v917
          %967 = vmatprep.subr.mxu0 0.0
          %968 = vmatpush1.msra.mxu0 %v918
          %969 = vmatprep.subr.mxu0 0.0
          %970 = vmatpush1.msra.mxu0 %v919
          %971 = vmatprep.subr.mxu0 0.0
          %972 = vmatpush1.msra.mxu0 %v920
          %973 = vmatprep.subr.mxu0 0.0
          %974 = vmatpush1.msra.mxu0 %v921
          %975 = vmatprep.subr.mxu0 0.0
          %976 = vmatpush1.msra.mxu0 %v922
          %977 = vmatprep.subr.mxu0 0.0
          %978 = vmatpush1.msra.mxu0 %v923
          %979 = vmatprep.subr.mxu0 0.0
          %980 = vmatpush1.msra.mxu0 %v924
          %981 = vmatprep.subr.mxu0 0.0
          %982 = vmatpush1.msra.mxu0 %v925
          %983 = vmatprep.subr.mxu0 0.0
          %984 = vmatpush1.msra.mxu0 %v926
          %985 = vmatprep.subr.mxu0 0.0
          %986 = vmatpush1.msra.mxu0 %v927
          %987 = vmatprep.subr.mxu0 0.0
          %988 = vmatpush1.msra.mxu0 %v928
          %989 = vmatprep.subr.mxu0 0.0
          %990 = vmatpush1.msra.mxu0 %v929
          %991 = vmatprep.subr.mxu0 0.0
          %992 = vmatpush1.msra.mxu0 %v930
          %993 = vmatprep.subr.mxu0 0.0
          %994 = vmatpush1.msra.mxu0 %v931
          %995 = vmatprep.subr.mxu0 0.0
          %996 = vmatpush1.msra.mxu0 %v932
          %997 = vmatprep.subr.mxu0 0.0
          %998 = vmatpush1.msra.mxu0 %v933
          %999 = vmatprep.subr.mxu0 0.0
          %1000 = vmatpush1.msra.mxu0 %v934
          %1001 = vmatprep.subr.mxu0 0.0
          %1002 = vmatpush1.msra.mxu0 %v935
          %1003 = vmatprep.subr.mxu0 0.0
          %1004 = vmatpush1.msra.mxu0 %v936
          %1005 = vmatprep.subr.mxu0 0.0
          %1006 = vmatpush1.msra.mxu0 %v937
          %1007 = vmatprep.subr.mxu0 0.0
          %1008 = vmatpush1.msra.mxu0 %v938
          %1009 = vmatprep.subr.mxu0 0.0
          %1010 = vmatpush1.msra.mxu0 %v939
          %1011 = vmatprep.mubr.f32.mxu0 %v777
          %1012 = vmatmul.mubr.f32.gmra.mrb[0].mxu0 %v776
          %v1013 = vpop.f32.mrb[0].mxu0
          %v1014 = vadd.f32 %v945, %v1013
          %v1015 = vpop.f32.mrb[0].mxu0
          %1016 = vmatprep.mubr.f32.mxu0 %v779
          %1017 = vmatmul.mubr.f32.gmra.mrb[0].mxu0 %v778
          %v1018 = vpop.f32.mrb[0].mxu0
          %v1019 = vadd.f32 %v945, %v1018
          %v1020 = vpop.f32.mrb[0].mxu0
          %1021 = vmatprep.mubr.f32.mxu0 %v781
          %1022 = vmatmul.mubr.f32.gmra.mrb[0].mxu0 %v780
          %v1023 = vpop.f32.mrb[0].mxu0
          %v1024 = vadd.f32 %v945, %v1023
          %v1025 = vpop.f32.mrb[0].mxu0
          %1026 = vmatprep.mubr.f32.mxu0 %v783
          %1027 = vmatmul.mubr.f32.gmra.mrb[0].mxu0 %v782
          %v1028 = vpop.f32.mrb[0].mxu0
          %v1029 = vadd.f32 %v945, %v1028
          %v1030 = vpop.f32.mrb[0].mxu0
          %1031 = vdwg.mxu0
          %v1032 = vpack.c.bf16 %v895, %v890
          %v1033 = vpack.c.bf16 %v905, %v900
          %1034 = vst [vmem:[#allocation2] sm:$0xff] %v1032
          %1035 = vst [vmem:[#allocation2 + $0x8] sm:$0xff] %v1033
          %v1036 = vpack.c.bf16 %v1019, %v1014
          %v1037 = vpack.c.bf16 %v1029, %v1024
          %1038 = vst [vmem:[#allocation2 + $0x10] sm:$0xff] %v1036
          %1039 = vst [vmem:[#allocation2 + $0x18] sm:$0xff] %v1037
          %1040 = vst [vmem:[#allocation3] sm:$0x1] -1e+30
          %1041 = vst [vmem:[#allocation4] sm:$0xff] 0.0
          %1042 = vst [vmem:[#allocation4 + $0x8] sm:$0xff] 0.0
          %1043 = vst [vmem:[#allocation4 + $0x10] sm:$0xff] 0.0
          %1044 = vst [vmem:[#allocation4 + $0x18] sm:$0xff] 0.0
          %1045 = vst [vmem:[#allocation5] sm:$0xff] 0.0
          %1046 = vst [vmem:[#allocation5 + $0x8] sm:$0xff] 0.0
          %1047 = vst [vmem:[#allocation5 + $0x10] sm:$0xff] 0.0
          %1048 = vst [vmem:[#allocation5 + $0x18] sm:$0xff] 0.0
        $region151: #{tpu_custom_call.1} parent=130 // pred_fallthru
          _
        %v1049 = vld [vmem:[%s759] sm:$0xff]
        %v1050 = vld [vmem:[%s759 + $0x8] sm:$0xff]
        %v1051 = vld [vmem:[%s759 + $0x10] sm:$0xff]
        %v1052 = vld [vmem:[%s759 + $0x18] sm:$0xff]
        %v1053 = vld [vmem:[%s759 + $0x20] sm:$0xff]
        %v1054 = vld [vmem:[%s759 + $0x28] sm:$0xff]
        %v1055 = vld [vmem:[%s759 + $0x30] sm:$0xff]
        %v1056 = vld [vmem:[%s759 + $0x38] sm:$0xff]
        %v1057 = vld [vmem:[%s759 + $0x40] sm:$0xff]
        %v1058 = vld [vmem:[%s759 + $0x48] sm:$0xff]
        %v1059 = vld [vmem:[%s759 + $0x50] sm:$0xff]
        %v1060 = vld [vmem:[%s759 + $0x58] sm:$0xff]
        %v1061 = vld [vmem:[%s759 + $0x60] sm:$0xff]
        %v1062 = vld [vmem:[%s759 + $0x68] sm:$0xff]
        %v1063 = vld [vmem:[%s759 + $0x70] sm:$0xff]
        %v1064 = vld [vmem:[%s759 + $0x78] sm:$0xff]
        %v1065 = vld [vmem:[%s765] sm:$0xff]
        %v1066 = vld [vmem:[%s765 + $0x8] sm:$0xff]
        %v1067 = vld [vmem:[%s765 + $0x10] sm:$0xff]
        %v1068 = vld [vmem:[%s765 + $0x18] sm:$0xff]
        %v1069 = vld [vmem:[%s765 + $0x20] sm:$0xff]
        %v1070 = vld [vmem:[%s765 + $0x28] sm:$0xff]
        %v1071 = vld [vmem:[%s765 + $0x30] sm:$0xff]
        %v1072 = vld [vmem:[%s765 + $0x38] sm:$0xff]
        %v1073 = vld [vmem:[%s765 + $0x40] sm:$0xff]
        %v1074 = vld [vmem:[%s765 + $0x48] sm:$0xff]
        %v1075 = vld [vmem:[%s765 + $0x50] sm:$0xff]
        %v1076 = vld [vmem:[%s765 + $0x58] sm:$0xff]
        %v1077 = vld [vmem:[%s765 + $0x60] sm:$0xff]
        %v1078 = vld [vmem:[%s765 + $0x68] sm:$0xff]
        %v1079 = vld [vmem:[%s765 + $0x70] sm:$0xff]
        %v1080 = vld [vmem:[%s765 + $0x78] sm:$0xff]
        %v1081 = vlaneseq
        %v1082 = vand.u32 %v1081, 127
        %1083 = vset.pattern.permute.xlu0 0
        %1084 = vperm.xlu0 %1083, %v1049
        %v1085 = vpop.permute.xlu0 %1084
        %1086 = vset.pattern.permute.xlu0 0
        %1087 = vperm.xlu0 %1086, %v1050
        %v1088 = vpop.permute.xlu0 %1087
        %1089 = vset.pattern.permute.xlu0 0
        %1090 = vperm.xlu0 %1089, %v1051
        %v1091 = vpop.permute.xlu0 %1090
        %1092 = vset.pattern.permute.xlu0 0
        %1093 = vperm.xlu0 %1092, %v1052
        %v1094 = vpop.permute.xlu0 %1093
        %1095 = vset.pattern.permute.xlu0 0
        %1096 = vperm.xlu0 %1095, %v1053
        %v1097 = vpop.permute.xlu0 %1096
        %1098 = vset.pattern.permute.xlu0 0
        %1099 = vperm.xlu0 %1098, %v1054
        %v1100 = vpop.permute.xlu0 %1099
        %1101 = vset.pattern.permute.xlu0 0
        %1102 = vperm.xlu0 %1101, %v1055
        %v1103 = vpop.permute.xlu0 %1102
        %1104 = vset.pattern.permute.xlu0 0
        %1105 = vperm.xlu0 %1104, %v1056
        %v1106 = vpop.permute.xlu0 %1105
        %1107 = vset.pattern.permute.xlu0 0
        %1108 = vperm.xlu0 %1107, %v1057
        %v1109 = vpop.permute.xlu0 %1108
        %1110 = vset.pattern.permute.xlu0 0
        %1111 = vperm.xlu0 %1110, %v1058
        %v1112 = vpop.permute.xlu0 %1111
        %1113 = vset.pattern.permute.xlu0 0
        %1114 = vperm.xlu0 %1113, %v1059
        %v1115 = vpop.permute.xlu0 %1114
        %1116 = vset.pattern.permute.xlu0 0
        %1117 = vperm.xlu0 %1116, %v1060
        %v1118 = vpop.permute.xlu0 %1117
        %1119 = vset.pattern.permute.xlu0 0
        %1120 = vperm.xlu0 %1119, %v1061
        %v1121 = vpop.permute.xlu0 %1120
        %1122 = vset.pattern.permute.xlu0 0
        %1123 = vperm.xlu0 %1122, %v1062
        %v1124 = vpop.permute.xlu0 %1123
        %1125 = vset.pattern.permute.xlu0 0
        %1126 = vperm.xlu0 %1125, %v1063
        %v1127 = vpop.permute.xlu0 %1126
        %1128 = vset.pattern.permute.xlu0 0
        %1129 = vperm.xlu0 %1128, %v1064
        %v1130 = vpop.permute.xlu0 %1129
        %vm1131 = vcmp.eq.s32.totalorder %v1082, %v1085
        %vm1132 = vcmp.eq.s32.totalorder %v1082, %v1088
        %vm1133 = vcmp.eq.s32.totalorder %v1082, %v1091
        %vm1134 = vcmp.eq.s32.totalorder %v1082, %v1094
        %vm1135 = vcmp.eq.s32.totalorder %v1082, %v1097
        %vm1136 = vcmp.eq.s32.totalorder %v1082, %v1100
        %vm1137 = vcmp.eq.s32.totalorder %v1082, %v1103
        %vm1138 = vcmp.eq.s32.totalorder %v1082, %v1106
        %vm1139 = vcmp.eq.s32.totalorder %v1082, %v1109
        %vm1140 = vcmp.eq.s32.totalorder %v1082, %v1112
        %vm1141 = vcmp.eq.s32.totalorder %v1082, %v1115
        %vm1142 = vcmp.eq.s32.totalorder %v1082, %v1118
        %vm1143 = vcmp.eq.s32.totalorder %v1082, %v1121
        %vm1144 = vcmp.eq.s32.totalorder %v1082, %v1124
        %vm1145 = vcmp.eq.s32.totalorder %v1082, %v1127
        %vm1146 = vcmp.eq.s32.totalorder %v1082, %v1130
        %v1147 = vadd.s32 %v1065, 32
        %v1148 = vadd.s32 %v1066, 32
        %v1149 = vadd.s32 %v1067, 32
        %v1150 = vadd.s32 %v1068, 32
        %v1151 = vadd.s32 %v1069, 32
        %v1152 = vadd.s32 %v1070, 32
        %v1153 = vadd.s32 %v1071, 32
        %v1154 = vadd.s32 %v1072, 32
        %v1155 = vadd.s32 %v1073, 32
        %v1156 = vadd.s32 %v1074, 32
        %v1157 = vadd.s32 %v1075, 32
        %v1158 = vadd.s32 %v1076, 32
        %v1159 = vadd.s32 %v1077, 32
        %v1160 = vadd.s32 %v1078, 32
        %v1161 = vadd.s32 %v1079, 32
        %v1162 = vadd.s32 %v1080, 32
        %1163 = vset.pattern.permute.xlu0 0
        %1164 = vperm.xlu0 %1163, %v1147
        %v1165 = vpop.permute.xlu0 %1164
        %1166 = vset.pattern.permute.xlu0 0
        %1167 = vperm.xlu0 %1166, %v1148
        %v1168 = vpop.permute.xlu0 %1167
        %1169 = vset.pattern.permute.xlu0 0
        %1170 = vperm.xlu0 %1169, %v1149
        %v1171 = vpop.permute.xlu0 %1170
        %1172 = vset.pattern.permute.xlu0 0
        %1173 = vperm.xlu0 %1172, %v1150
        %v1174 = vpop.permute.xlu0 %1173
        %1175 = vset.pattern.permute.xlu0 0
        %1176 = vperm.xlu0 %1175, %v1151
        %v1177 = vpop.permute.xlu0 %1176
        %1178 = vset.pattern.permute.xlu0 0
        %1179 = vperm.xlu0 %1178, %v1152
        %v1180 = vpop.permute.xlu0 %1179
        %1181 = vset.pattern.permute.xlu0 0
        %1182 = vperm.xlu0 %1181, %v1153
        %v1183 = vpop.permute.xlu0 %1182
        %1184 = vset.pattern.permute.xlu0 0
        %1185 = vperm.xlu0 %1184, %v1154
        %v1186 = vpop.permute.xlu0 %1185
        %1187 = vset.pattern.permute.xlu0 0
        %1188 = vperm.xlu0 %1187, %v1155
        %v1189 = vpop.permute.xlu0 %1188
        %1190 = vset.pattern.permute.xlu0 0
        %1191 = vperm.xlu0 %1190, %v1156
        %v1192 = vpop.permute.xlu0 %1191
        %1193 = vset.pattern.permute.xlu0 0
        %1194 = vperm.xlu0 %1193, %v1157
        %v1195 = vpop.permute.xlu0 %1194
        %1196 = vset.pattern.permute.xlu0 0
        %1197 = vperm.xlu0 %1196, %v1158
        %v1198 = vpop.permute.xlu0 %1197
        %1199 = vset.pattern.permute.xlu0 0
        %1200 = vperm.xlu0 %1199, %v1159
        %v1201 = vpop.permute.xlu0 %1200
        %1202 = vset.pattern.permute.xlu0 0
        %1203 = vperm.xlu0 %1202, %v1160
        %v1204 = vpop.permute.xlu0 %1203
        %1205 = vset.pattern.permute.xlu0 0
        %1206 = vperm.xlu0 %1205, %v1161
        %v1207 = vpop.permute.xlu0 %1206
        %1208 = vset.pattern.permute.xlu0 0
        %1209 = vperm.xlu0 %1208, %v1162
        %v1210 = vpop.permute.xlu0 %1209
        %vm1211 = vcmp.eq.s32.totalorder %v1082, %v1165
        %vm1212 = vcmp.eq.s32.totalorder %v1082, %v1168
        %vm1213 = vcmp.eq.s32.totalorder %v1082, %v1171
        %vm1214 = vcmp.eq.s32.totalorder %v1082, %v1174
        %vm1215 = vcmp.eq.s32.totalorder %v1082, %v1177
        %vm1216 = vcmp.eq.s32.totalorder %v1082, %v1180
        %vm1217 = vcmp.eq.s32.totalorder %v1082, %v1183
        %vm1218 = vcmp.eq.s32.totalorder %v1082, %v1186
        %vm1219 = vcmp.eq.s32.totalorder %v1082, %v1189
        %vm1220 = vcmp.eq.s32.totalorder %v1082, %v1192
        %vm1221 = vcmp.eq.s32.totalorder %v1082, %v1195
        %vm1222 = vcmp.eq.s32.totalorder %v1082, %v1198
        %vm1223 = vcmp.eq.s32.totalorder %v1082, %v1201
        %vm1224 = vcmp.eq.s32.totalorder %v1082, %v1204
        %vm1225 = vcmp.eq.s32.totalorder %v1082, %v1207
        %vm1226 = vcmp.eq.s32.totalorder %v1082, %v1210
        %vm1227 = vmor %vm1131, %vm1211
        %vm1228 = vmor %vm1132, %vm1212
        %vm1229 = vmor %vm1133, %vm1213
        %vm1230 = vmor %vm1134, %vm1214
        %vm1231 = vmor %vm1135, %vm1215
        %vm1232 = vmor %vm1136, %vm1216
        %vm1233 = vmor %vm1137, %vm1217
        %vm1234 = vmor %vm1138, %vm1218
        %vm1235 = vmor %vm1139, %vm1219
        %vm1236 = vmor %vm1140, %vm1220
        %vm1237 = vmor %vm1141, %vm1221
        %vm1238 = vmor %vm1142, %vm1222
        %vm1239 = vmor %vm1143, %vm1223
        %vm1240 = vmor %vm1144, %vm1224
        %vm1241 = vmor %vm1145, %vm1225
        %vm1242 = vmor %vm1146, %vm1226
        %v1243 = vsel %vm1227, 1, 0
        %v1244 = vsel %vm1228, 1, 0
        %v1245 = vsel %vm1229, 1, 0
        %v1246 = vsel %vm1230, 1, 0
        %v1247 = vsel %vm1231, 1, 0
        %v1248 = vsel %vm1232, 1, 0
        %v1249 = vsel %vm1233, 1, 0
        %v1250 = vsel %vm1234, 1, 0
        %v1251 = vsel %vm1235, 1, 0
        %v1252 = vsel %vm1236, 1, 0
        %v1253 = vsel %vm1237, 1, 0
        %v1254 = vsel %vm1238, 1, 0
        %v1255 = vsel %vm1239, 1, 0
        %v1256 = vsel %vm1240, 1, 0
        %v1257 = vsel %vm1241, 1, 0
        %v1258 = vsel %vm1242, 1, 0
        %v1259 = vcvt.s32.f32 %v1243
        %v1260 = vcvt.s32.f32 %v1244
        %v1261 = vcvt.s32.f32 %v1245
        %v1262 = vcvt.s32.f32 %v1246
        %v1263 = vcvt.s32.f32 %v1247
        %v1264 = vcvt.s32.f32 %v1248
        %v1265 = vcvt.s32.f32 %v1249
        %v1266 = vcvt.s32.f32 %v1250
        %v1267 = vcvt.s32.f32 %v1251
        %v1268 = vcvt.s32.f32 %v1252
        %v1269 = vcvt.s32.f32 %v1253
        %v1270 = vcvt.s32.f32 %v1254
        %v1271 = vcvt.s32.f32 %v1255
        %v1272 = vcvt.s32.f32 %v1256
        %v1273 = vcvt.s32.f32 %v1257
        %v1274 = vcvt.s32.f32 %v1258
        %v1275 = vpack.c.bf16 %v1260, %v1259
        %v1276 = vpack.c.bf16 %v1262, %v1261
        %v1277 = vpack.c.bf16 %v1264, %v1263
        %v1278 = vpack.c.bf16 %v1266, %v1265
        %v1279 = vpack.c.bf16 %v1268, %v1267
        %v1280 = vpack.c.bf16 %v1270, %v1269
        %v1281 = vpack.c.bf16 %v1272, %v1271
        %v1282 = vpack.c.bf16 %v1274, %v1273
        %v1283 = vld [vmem:[#allocation2] sm:$0xff]
        %v1284 = vld [vmem:[#allocation2 + $0x8] sm:$0xff]
        %v1285 = vld [vmem:[#allocation2 + $0x10] sm:$0xff]
        %v1286 = vld [vmem:[#allocation2 + $0x18] sm:$0xff]
        %vm1287 = vcmask 523264
        %v1289 = vsel %vm1287, %v1275, 0
        %v1292 = vsel %vm1287, %v1276, 0
        %v1295 = vsel %vm1287, %v1277, 0
        %v1298 = vsel %vm1287, %v1278, 0
        %v1301 = vsel %vm1287, %v1279, 0
        %v1304 = vsel %vm1287, %v1280, 0
        %v1307 = vsel %vm1287, %v1281, 0
        %v1310 = vsel %vm1287, %v1282, 0
        %1312 = vmatprep.subr.bf16.mxu0 0
        %1313 = vmatpush1.bf16.msra.mxu0 %v1283
        %1314 = vmatprep.subr.bf16.mxu0 0
        %1315 = vmatpush1.bf16.msra.mxu0 %v1284
        %1316 = vmatprep.subr.bf16.mxu0 0
        %1317 = vmatpush1.bf16.msra.mxu0 %v1285
        %1318 = vmatprep.subr.bf16.mxu0 0
        %1319 = vmatpush1.bf16.msra.mxu0 %v1286
        %1320 = vmatprep.subr.bf16.mxu0 0
        %1321 = vmatpush1.bf16.msra.mxu0 0
        %1322 = vmatprep.subr.bf16.mxu0 0
        %1323 = vmatpush1.bf16.msra.mxu0 0
        %1324 = vmatprep.subr.bf16.mxu0 0
        %1325 = vmatpush1.bf16.msra.mxu0 0
        %1326 = vmatprep.subr.bf16.mxu0 0
        %1327 = vmatpush1.bf16.msra.mxu0 0
        %1328 = vmatprep.subr.bf16.mxu0 0
        %1329 = vmatpush1.bf16.msra.mxu0 0
        %1330 = vmatprep.subr.bf16.mxu0 0
        %1331 = vmatpush1.bf16.msra.mxu0 0
        %1332 = vmatprep.subr.bf16.mxu0 0
        %1333 = vmatpush1.bf16.msra.mxu0 0
        %1334 = vmatprep.subr.bf16.mxu0 0
        %1335 = vmatpush1.bf16.msra.mxu0 0
        %1336 = vmatprep.subr.bf16.mxu0 0
        %1337 = vmatpush1.bf16.msra.mxu0 0
        %1338 = vmatprep.subr.bf16.mxu0 0
        %1339 = vmatpush1.bf16.msra.mxu0 0
        %1340 = vmatprep.subr.bf16.mxu0 0
        %1341 = vmatpush1.bf16.msra.mxu0 0
        %1342 = vmatprep.subr.bf16.mxu0 0
        %1343 = vmatpush1.bf16.msra.mxu0 0
        %1344 = vmatprep.mubr.bf16.mxu0 0
        %1345 = vmatmul.mubr.bf16.gmra.mrb[0].mxu0 %v1289
        %v1346 = vpop.f32.mrb[0].mxu0
        %v1347 = vadd.f32 0.0, %v1346
        %v1348 = vpop.f32.mrb[0].mxu0
        %v1349 = vpop.f32.mrb[0].mxu0
        %v1350 = vadd.f32 0.0, %v1349
        %v1351 = vpop.f32.mrb[0].mxu0
        %1352 = vmatprep.mubr.bf16.mxu0 0
        %1353 = vmatmul.mubr.bf16.gmra.mrb[0].mxu0 %v1292
        %v1354 = vpop.f32.mrb[0].mxu0
        %v1355 = vadd.f32 0.0, %v1354
        %v1356 = vpop.f32.mrb[0].mxu0
        %v1357 = vpop.f32.mrb[0].mxu0
        %v1358 = vadd.f32 0.0, %v1357
        %v1359 = vpop.f32.mrb[0].mxu0
        %1360 = vmatprep.mubr.bf16.mxu0 0
        %1361 = vmatmul.mubr.bf16.gmra.mrb[0].mxu0 %v1295
        %v1362 = vpop.f32.mrb[0].mxu0
        %v1363 = vadd.f32 0.0, %v1362
        %v1364 = vpop.f32.mrb[0].mxu0
        %v1365 = vpop.f32.mrb[0].mxu0
        %v1366 = vadd.f32 0.0, %v1365
        %v1367 = vpop.f32.mrb[0].mxu0
        %1368 = vmatprep.mubr.bf16.mxu0 0
        %1369 = vmatmul.mubr.bf16.gmra.mrb[0].mxu0 %v1298
        %v1370 = vpop.f32.mrb[0].mxu0
        %v1371 = vadd.f32 0.0, %v1370
        %v1372 = vpop.f32.mrb[0].mxu0
        %v1373 = vpop.f32.mrb[0].mxu0
        %v1374 = vadd.f32 0.0, %v1373
        %v1375 = vpop.f32.mrb[0].mxu0
        %1376 = vmatprep.mubr.bf16.mxu0 0
        %1377 = vmatmul.mubr.bf16.gmra.mrb[0].mxu0 %v1301
        %v1378 = vpop.f32.mrb[0].mxu0
        %v1379 = vadd.f32 0.0, %v1378
        %v1380 = vpop.f32.mrb[0].mxu0
        %v1381 = vpop.f32.mrb[0].mxu0
        %v1382 = vadd.f32 0.0, %v1381
        %v1383 = vpop.f32.mrb[0].mxu0
        %1384 = vmatprep.mubr.bf16.mxu0 0
        %1385 = vmatmul.mubr.bf16.gmra.mrb[0].mxu0 %v1304
        %v1386 = vpop.f32.mrb[0].mxu0
        %v1387 = vadd.f32 0.0, %v1386
        %v1388 = vpop.f32.mrb[0].mxu0
        %v1389 = vpop.f32.mrb[0].mxu0
        %v1390 = vadd.f32 0.0, %v1389
        %v1391 = vpop.f32.mrb[0].mxu0
        %1392 = vmatprep.mubr.bf16.mxu0 0
        %1393 = vmatmul.mubr.bf16.gmra.mrb[0].mxu0 %v1307
        %v1394 = vpop.f32.mrb[0].mxu0
        %v1395 = vadd.f32 0.0, %v1394
        %v1396 = vpop.f32.mrb[0].mxu0
        %v1397 = vpop.f32.mrb[0].mxu0
        %v1398 = vadd.f32 0.0, %v1397
        %v1399 = vpop.f32.mrb[0].mxu0
        %1400 = vmatprep.mubr.bf16.mxu0 0
        %1401 = vmatmul.mubr.bf16.gmra.mrb[0].mxu0 %v1310
        %v1402 = vpop.f32.mrb[0].mxu0
        %v1403 = vadd.f32 0.0, %v1402
        %v1404 = vpop.f32.mrb[0].mxu0
        %v1405 = vpop.f32.mrb[0].mxu0
        %v1406 = vadd.f32 0.0, %v1405
        %v1407 = vpop.f32.mrb[0].mxu0
        %1408 = vdwg.mxu0
        %v1409 = vld [vmem:[%s680] sm:$0xf]
        %v1410 = vld [vmem:[%s680 + $0x4] sm:$0xf]
        %v1411 = vld [vmem:[%s680 + $0x8] sm:$0xf]
        %v1412 = vld [vmem:[%s680 + $0xc] sm:$0xf]
        %v1413 = vld [vmem:[%s680 + $0x10] sm:$0xf]
        %v1414 = vld [vmem:[%s680 + $0x14] sm:$0xf]
        %v1415 = vld [vmem:[%s680 + $0x18] sm:$0xf]
        %v1416 = vld [vmem:[%s680 + $0x1c] sm:$0xf]
        %v1417 = vld [vmem:[%s680 + $0x20] sm:$0xf]
        %v1418 = vld [vmem:[%s680 + $0x24] sm:$0xf]
        %v1419 = vld [vmem:[%s680 + $0x28] sm:$0xf]
        %v1420 = vld [vmem:[%s680 + $0x2c] sm:$0xf]
        %v1421 = vld [vmem:[%s680 + $0x30] sm:$0xf]
        %v1422 = vld [vmem:[%s680 + $0x34] sm:$0xf]
        %v1423 = vld [vmem:[%s680 + $0x38] sm:$0xf]
        %v1424 = vld [vmem:[%s680 + $0x3c] sm:$0xf]
        %v1425 = vunpack.c.l.bf16 %v1409
        %v1426 = vunpack.c.l.bf16 %v1410
        %v1427 = vunpack.c.l.bf16 %v1411
        %v1428 = vunpack.c.l.bf16 %v1412
        %v1429 = vunpack.c.l.bf16 %v1413
        %v1430 = vunpack.c.l.bf16 %v1414
        %v1431 = vunpack.c.l.bf16 %v1415
        %v1432 = vunpack.c.l.bf16 %v1416
        %v1433 = vunpack.c.l.bf16 %v1417
        %v1434 = vunpack.c.l.bf16 %v1418
        %v1435 = vunpack.c.l.bf16 %v1419
        %v1436 = vunpack.c.l.bf16 %v1420
        %v1437 = vunpack.c.l.bf16 %v1421
        %v1438 = vunpack.c.l.bf16 %v1422
        %v1439 = vunpack.c.l.bf16 %v1423
        %v1440 = vunpack.c.l.bf16 %v1424
        %v1441 = vmul.f32 %v1347, %v1425
        %v1442 = vmul.f32 %v1350, %v1426
        %v1443 = vmul.f32 %v1355, %v1427
        %v1444 = vmul.f32 %v1358, %v1428
        %v1445 = vmul.f32 %v1363, %v1429
        %v1446 = vmul.f32 %v1366, %v1430
        %v1447 = vmul.f32 %v1371, %v1431
        %v1448 = vmul.f32 %v1374, %v1432
        %v1449 = vmul.f32 %v1379, %v1433
        %v1450 = vmul.f32 %v1382, %v1434
        %v1451 = vmul.f32 %v1387, %v1435
        %v1452 = vmul.f32 %v1390, %v1436
        %v1453 = vmul.f32 %v1395, %v1437
        %v1454 = vmul.f32 %v1398, %v1438
        %v1455 = vmul.f32 %v1403, %v1439
        %v1456 = vmul.f32 %v1406, %v1440
        %vm1457 = vcmp.gt.f32.partialorder %v1441, 0.0
        %vm1458 = vcmp.gt.f32.partialorder %v1442, 0.0
        %vm1459 = vcmp.gt.f32.partialorder %v1443, 0.0
        %vm1460 = vcmp.gt.f32.partialorder %v1444, 0.0
        %vm1461 = vcmp.gt.f32.partialorder %v1445, 0.0
        %vm1462 = vcmp.gt.f32.partialorder %v1446, 0.0
        %vm1463 = vcmp.gt.f32.partialorder %v1447, 0.0
        %vm1464 = vcmp.gt.f32.partialorder %v1448, 0.0
        %vm1465 = vcmp.gt.f32.partialorder %v1449, 0.0
        %vm1466 = vcmp.gt.f32.partialorder %v1450, 0.0
        %vm1467 = vcmp.gt.f32.partialorder %v1451, 0.0
        %vm1468 = vcmp.gt.f32.partialorder %v1452, 0.0
        %vm1469 = vcmp.gt.f32.partialorder %v1453, 0.0
        %vm1470 = vcmp.gt.f32.partialorder %v1454, 0.0
        %vm1471 = vcmp.gt.f32.partialorder %v1455, 0.0
        %vm1472 = vcmp.gt.f32.partialorder %v1456, 0.0
        %v1473 = vmul.f32 %v1441, 0.2
        %v1474 = vmul.f32 %v1442, 0.2
        %v1475 = vmul.f32 %v1443, 0.2
        %v1476 = vmul.f32 %v1444, 0.2
        %v1477 = vmul.f32 %v1445, 0.2
        %v1478 = vmul.f32 %v1446, 0.2
        %v1479 = vmul.f32 %v1447, 0.2
        %v1480 = vmul.f32 %v1448, 0.2
        %v1481 = vmul.f32 %v1449, 0.2
        %v1482 = vmul.f32 %v1450, 0.2
        %v1483 = vmul.f32 %v1451, 0.2
        %v1484 = vmul.f32 %v1452, 0.2
        %v1485 = vmul.f32 %v1453, 0.2
        %v1486 = vmul.f32 %v1454, 0.2
        %v1487 = vmul.f32 %v1455, 0.2
        %v1488 = vmul.f32 %v1456, 0.2
        %v1489 = vsel %vm1457, %v1441, %v1473
        %v1490 = vsel %vm1458, %v1442, %v1474
        %v1491 = vsel %vm1459, %v1443, %v1475
        %v1492 = vsel %vm1460, %v1444, %v1476
        %v1493 = vsel %vm1461, %v1445, %v1477
        %v1494 = vsel %vm1462, %v1446, %v1478
        %v1495 = vsel %vm1463, %v1447, %v1479
        %v1496 = vsel %vm1464, %v1448, %v1480
        %v1497 = vsel %vm1465, %v1449, %v1481
        %v1498 = vsel %vm1466, %v1450, %v1482
        %v1499 = vsel %vm1467, %v1451, %v1483
        %v1500 = vsel %vm1468, %v1452, %v1484
        %v1501 = vsel %vm1469, %v1453, %v1485
        %v1502 = vsel %vm1470, %v1454, %v1486
        %v1503 = vsel %vm1471, %v1455, %v1487
        %v1504 = vsel %vm1472, %v1456, %v1488
        %v1505 = vlaneseq
        %v1506 = vshrl.u32 %v1505, 7
        %v1507 = vadd.s32 %v1506, 8
        %v1508 = vadd.s32 %v1506, 16
        %v1509 = vadd.s32 %v1506, 24
        %v1510 = vadd.s32 %v1506, 32
        %v1511 = vadd.s32 %v1506, 40
        %v1512 = vadd.s32 %v1506, 48
        %v1513 = vadd.s32 %v1506, 56
        %v1514 = vadd.s32 %v1506, 64
        %v1515 = vadd.s32 %v1506, 72
        %v1516 = vadd.s32 %v1506, 80
        %v1517 = vadd.s32 %v1506, 88
        %v1518 = vadd.s32 %v1506, 96
        %v1519 = vadd.s32 %v1506, 104
        %v1520 = vadd.s32 %v1506, 112
        %v1521 = vadd.s32 %v1506, 120
        %s1522 = smul.u32 %s35, 128
        %v1523 = vstv %s1522
        %v1524 = vadd.s32 %v1506, %v1523
        %v1525 = vadd.s32 %v1507, %v1523
        %v1526 = vadd.s32 %v1508, %v1523
        %v1527 = vadd.s32 %v1509, %v1523
        %v1528 = vadd.s32 %v1510, %v1523
        %v1529 = vadd.s32 %v1511, %v1523
        %v1530 = vadd.s32 %v1512, %v1523
        %v1531 = vadd.s32 %v1513, %v1523
        %v1532 = vadd.s32 %v1514, %v1523
        %v1533 = vadd.s32 %v1515, %v1523
        %v1534 = vadd.s32 %v1516, %v1523
        %v1535 = vadd.s32 %v1517, %v1523
        %v1536 = vadd.s32 %v1518, %v1523
        %v1537 = vadd.s32 %v1519, %v1523
        %v1538 = vadd.s32 %v1520, %v1523
        %v1539 = vadd.s32 %v1521, %v1523
        %vm1540 = vcmp.lt.s32.totalorder %v1524, 300
        %vm1541 = vcmp.lt.s32.totalorder %v1525, 300
        %vm1542 = vcmp.lt.s32.totalorder %v1526, 300
        %vm1543 = vcmp.lt.s32.totalorder %v1527, 300
        %vm1544 = vcmp.lt.s32.totalorder %v1528, 300
        %vm1545 = vcmp.lt.s32.totalorder %v1529, 300
        %vm1546 = vcmp.lt.s32.totalorder %v1530, 300
        %vm1547 = vcmp.lt.s32.totalorder %v1531, 300
        %vm1548 = vcmp.lt.s32.totalorder %v1532, 300
        %vm1549 = vcmp.lt.s32.totalorder %v1533, 300
        %vm1550 = vcmp.lt.s32.totalorder %v1534, 300
        %vm1551 = vcmp.lt.s32.totalorder %v1535, 300
        %vm1552 = vcmp.lt.s32.totalorder %v1536, 300
        %vm1553 = vcmp.lt.s32.totalorder %v1537, 300
        %vm1554 = vcmp.lt.s32.totalorder %v1538, 300
        %vm1555 = vcmp.lt.s32.totalorder %v1539, 300
        %v1556 = vsel %vm1540, 1, 0
        %v1557 = vsel %vm1541, 1, 0
        %v1558 = vsel %vm1542, 1, 0
        %v1559 = vsel %vm1543, 1, 0
        %v1560 = vsel %vm1544, 1, 0
        %v1561 = vsel %vm1545, 1, 0
        %v1562 = vsel %vm1546, 1, 0
        %v1563 = vsel %vm1547, 1, 0
        %v1564 = vsel %vm1548, 1, 0
        %v1565 = vsel %vm1549, 1, 0
        %v1566 = vsel %vm1550, 1, 0
        %v1567 = vsel %vm1551, 1, 0
        %v1568 = vsel %vm1552, 1, 0
        %v1569 = vsel %vm1553, 1, 0
        %v1570 = vsel %vm1554, 1, 0
        %v1571 = vsel %vm1555, 1, 0
        %vm1572 = vcmp.eq.s32.totalorder %v1556, 1
        %vm1573 = vcmp.eq.s32.totalorder %v1557, 1
        %vm1574 = vcmp.eq.s32.totalorder %v1558, 1
        %vm1575 = vcmp.eq.s32.totalorder %v1559, 1
        %vm1576 = vcmp.eq.s32.totalorder %v1560, 1
        %vm1577 = vcmp.eq.s32.totalorder %v1561, 1
        %vm1578 = vcmp.eq.s32.totalorder %v1562, 1
        %vm1579 = vcmp.eq.s32.totalorder %v1563, 1
        %vm1580 = vcmp.eq.s32.totalorder %v1564, 1
        %vm1581 = vcmp.eq.s32.totalorder %v1565, 1
        %vm1582 = vcmp.eq.s32.totalorder %v1566, 1
        %vm1583 = vcmp.eq.s32.totalorder %v1567, 1
        %vm1584 = vcmp.eq.s32.totalorder %v1568, 1
        %vm1585 = vcmp.eq.s32.totalorder %v1569, 1
        %vm1586 = vcmp.eq.s32.totalorder %v1570, 1
        %vm1587 = vcmp.eq.s32.totalorder %v1571, 1
        %v1588 = vsel %vm1572, %v1489, -1e+30
        %v1589 = vsel %vm1573, %v1490, -1e+30
        %v1590 = vsel %vm1574, %v1491, -1e+30
        %v1591 = vsel %vm1575, %v1492, -1e+30
        %v1592 = vsel %vm1576, %v1493, -1e+30
        %v1593 = vsel %vm1577, %v1494, -1e+30
        %v1594 = vsel %vm1578, %v1495, -1e+30
        %v1595 = vsel %vm1579, %v1496, -1e+30
        %v1596 = vsel %vm1580, %v1497, -1e+30
        %v1597 = vsel %vm1581, %v1498, -1e+30
        %v1598 = vsel %vm1582, %v1499, -1e+30
        %v1599 = vsel %vm1583, %v1500, -1e+30
        %v1600 = vsel %vm1584, %v1501, -1e+30
        %v1601 = vsel %vm1585, %v1502, -1e+30
        %v1602 = vsel %vm1586, %v1503, -1e+30
        %v1603 = vsel %vm1587, %v1504, -1e+30
        %v1604 = vld [vmem:[#allocation3] sm:$0x1]
        %v1605 = vmax.f32 %v1588, %v1592
        %v1606 = vmax.f32 %v1589, %v1593
        %v1607 = vmax.f32 %v1590, %v1594
        %v1608 = vmax.f32 %v1591, %v1595
        %v1609 = vmax.f32 %v1605, %v1596
        %v1610 = vmax.f32 %v1606, %v1597
        %v1611 = vmax.f32 %v1607, %v1598
        %v1612 = vmax.f32 %v1608, %v1599
        %v1613 = vmax.f32 %v1609, %v1600
        %v1614 = vmax.f32 %v1610, %v1601
        %v1615 = vmax.f32 %v1611, %v1602
        %v1616 = vmax.f32 %v1612, %v1603
        %v1617 = vmax.f32 %v1613, %v1614
        %v1618 = vmax.f32 %v1615, %v1616
        %v1619 = vmax.f32 %v1617, %v1618
        %v1620 = vrot.slane %v1619, 4
        %v1621 = vmax.f32 %v1619, %v1620
        %v1622 = vrot.slane %v1621, 2
        %v1623 = vmax.f32 %v1621, %v1622
        %v1624 = vrot.slane %v1623, 1
        %v1625 = vmax.f32 %v1623, %v1624
        %v1626 = vmax.f32 %v1604, %v1625
        %v1627 = vsub.f32 %v1604, %v1626
        %v1628 = vmul.f32 %v1627, 1.442695
        %v1629 = vpow.pop %v1628
        %v1631 = vlaneseq
        %v1632 = vshrl.u32 %v1631, 7
        %v1633 = vsub.s32 0, %v1632
        %v1634 = vrot.slane %v1626, %v1633
        %v1636 = vsub.f32 %v1588, %v1634
        %v1637 = vsub.f32 %v1589, %v1634
        %v1638 = vsub.f32 %v1590, %v1634
        %v1639 = vsub.f32 %v1591, %v1634
        %v1640 = vsub.f32 %v1592, %v1634
        %v1641 = vsub.f32 %v1593, %v1634
        %v1642 = vsub.f32 %v1594, %v1634
        %v1643 = vsub.f32 %v1595, %v1634
        %v1644 = vsub.f32 %v1596, %v1634
        %v1645 = vsub.f32 %v1597, %v1634
        %v1646 = vsub.f32 %v1598, %v1634
        %v1647 = vsub.f32 %v1599, %v1634
        %v1648 = vsub.f32 %v1600, %v1634
        %v1649 = vsub.f32 %v1601, %v1634
        %v1650 = vsub.f32 %v1602, %v1634
        %v1651 = vsub.f32 %v1603, %v1634
        %v1652 = vmul.f32 %v1636, 1.442695
        %v1653 = vpow.pop %v1652
        %v1654 = vmul.f32 %v1637, 1.442695
        %v1655 = vpow.pop %v1654
        %v1656 = vmul.f32 %v1638, 1.442695
        %v1657 = vpow.pop %v1656
        %v1658 = vmul.f32 %v1639, 1.442695
        %v1659 = vpow.pop %v1658
        %v1660 = vmul.f32 %v1640, 1.442695
        %v1661 = vpow.pop %v1660
        %v1662 = vmul.f32 %v1641, 1.442695
        %v1663 = vpow.pop %v1662
        %v1664 = vmul.f32 %v1642, 1.442695
        %v1665 = vpow.pop %v1664
        %v1666 = vmul.f32 %v1643, 1.442695
        %v1667 = vpow.pop %v1666
        %v1668 = vmul.f32 %v1644, 1.442695
        %v1669 = vpow.pop %v1668
        %v1670 = vmul.f32 %v1645, 1.442695
        %v1671 = vpow.pop %v1670
        %v1672 = vmul.f32 %v1646, 1.442695
        %v1673 = vpow.pop %v1672
        %v1674 = vmul.f32 %v1647, 1.442695
        %v1675 = vpow.pop %v1674
        %v1676 = vmul.f32 %v1648, 1.442695
        %v1677 = vpow.pop %v1676
        %v1678 = vmul.f32 %v1649, 1.442695
        %v1679 = vpow.pop %v1678
        %v1680 = vmul.f32 %v1650, 1.442695
        %v1681 = vpow.pop %v1680
        %v1682 = vmul.f32 %v1651, 1.442695
        %v1683 = vpow.pop %v1682
        %v1684 = vld [vmem:[%s656] sm:$0xf]
        %v1685 = vld [vmem:[%s656 + $0x4] sm:$0xf]
        %v1686 = vld [vmem:[%s656 + $0x8] sm:$0xf]
        %v1687 = vld [vmem:[%s656 + $0xc] sm:$0xf]
        %v1692 = vunpack.c.l.b16 %v1684
        %v1693 = vunpack.c.l.b16 %v1685
        %v1694 = vunpack.c.l.b16 %v1686
        %v1695 = vunpack.c.l.b16 %v1687
        %v1696 = vpack.c.b16 %v1693, %v1692
        %v1697 = vpack.c.b16 %v1695, %v1694
        %vm1700 = vcmask 261120
        %v1701 = vsel %vm1700, %v1275, 0
        %v1703 = vsel %vm1700, %v1276, 0
        %v1705 = vsel %vm1700, %v1277, 0
        %v1707 = vsel %vm1700, %v1278, 0
        %v1709 = vsel %vm1700, %v1279, 0
        %v1711 = vsel %vm1700, %v1280, 0
        %v1713 = vsel %vm1700, %v1281, 0
        %v1715 = vsel %vm1700, %v1282, 0
        %1717 = vmatprep.subr.bf16.mxu0 0
        %1718 = vmatpush1.bf16.msra.mxu0 %v1696
        %1719 = vmatprep.subr.bf16.mxu0 0
        %1720 = vmatpush1.bf16.msra.mxu0 %v1697
        %1721 = vmatprep.subr.bf16.mxu0 0
        %1722 = vmatpush1.bf16.msra.mxu0 0
        %1723 = vmatprep.subr.bf16.mxu0 0
        %1724 = vmatpush1.bf16.msra.mxu0 0
        %1725 = vmatprep.subr.bf16.mxu0 0
        %1726 = vmatpush1.bf16.msra.mxu0 0
        %1727 = vmatprep.subr.bf16.mxu0 0
        %1728 = vmatpush1.bf16.msra.mxu0 0
        %1729 = vmatprep.subr.bf16.mxu0 0
        %1730 = vmatpush1.bf16.msra.mxu0 0
        %1731 = vmatprep.subr.bf16.mxu0 0
        %1732 = vmatpush1.bf16.msra.mxu0 0
        %1733 = vmatprep.subr.bf16.mxu0 0
        %1734 = vmatpush1.bf16.msra.mxu0 0
        %1735 = vmatprep.subr.bf16.mxu0 0
        %1736 = vmatpush1.bf16.msra.mxu0 0
        %1737 = vmatprep.subr.bf16.mxu0 0
        %1738 = vmatpush1.bf16.msra.mxu0 0
        %1739 = vmatprep.subr.bf16.mxu0 0
        %1740 = vmatpush1.bf16.msra.mxu0 0
        %1741 = vmatprep.subr.bf16.mxu0 0
        %1742 = vmatpush1.bf16.msra.mxu0 0
        %1743 = vmatprep.subr.bf16.mxu0 0
        %1744 = vmatpush1.bf16.msra.mxu0 0
        %1745 = vmatprep.subr.bf16.mxu0 0
        %1746 = vmatpush1.bf16.msra.mxu0 0
        %1747 = vmatprep.subr.bf16.mxu0 0
        %1748 = vmatpush1.bf16.msra.mxu0 0
        %1749 = vmatprep.mubr.bf16.mxu0 0
        %1750 = vmatmul.mubr.bf16.gmra.mrb[0].mxu0 %v1701
        %v1751 = vpop.f32.mrb[0].mxu0
        %v1752 = vadd.f32 0.0, %v1751
        %v1753 = vpop.f32.mrb[0].mxu0
        %v1754 = vpop.f32.mrb[0].mxu0
        %v1755 = vadd.f32 0.0, %v1754
        %v1756 = vpop.f32.mrb[0].mxu0
        %1757 = vmatprep.mubr.bf16.mxu0 0
        %1758 = vmatmul.mubr.bf16.gmra.mrb[0].mxu0 %v1703
        %v1759 = vpop.f32.mrb[0].mxu0
        %v1760 = vadd.f32 0.0, %v1759
        %v1761 = vpop.f32.mrb[0].mxu0
        %v1762 = vpop.f32.mrb[0].mxu0
        %v1763 = vadd.f32 0.0, %v1762
        %v1764 = vpop.f32.mrb[0].mxu0
        %1765 = vmatprep.mubr.bf16.mxu0 0
        %1766 = vmatmul.mubr.bf16.gmra.mrb[0].mxu0 %v1705
        %v1767 = vpop.f32.mrb[0].mxu0
        %v1768 = vadd.f32 0.0, %v1767
        %v1769 = vpop.f32.mrb[0].mxu0
        %v1770 = vpop.f32.mrb[0].mxu0
        %v1771 = vadd.f32 0.0, %v1770
        %v1772 = vpop.f32.mrb[0].mxu0
        %1773 = vmatprep.mubr.bf16.mxu0 0
        %1774 = vmatmul.mubr.bf16.gmra.mrb[0].mxu0 %v1707
        %v1775 = vpop.f32.mrb[0].mxu0
        %v1776 = vadd.f32 0.0, %v1775
        %v1777 = vpop.f32.mrb[0].mxu0
        %v1778 = vpop.f32.mrb[0].mxu0
        %v1779 = vadd.f32 0.0, %v1778
        %v1780 = vpop.f32.mrb[0].mxu0
        %1781 = vmatprep.mubr.bf16.mxu0 0
        %1782 = vmatmul.mubr.bf16.gmra.mrb[0].mxu0 %v1709
        %v1783 = vpop.f32.mrb[0].mxu0
        %v1784 = vadd.f32 0.0, %v1783
        %v1785 = vpop.f32.mrb[0].mxu0
        %v1786 = vpop.f32.mrb[0].mxu0
        %v1787 = vadd.f32 0.0, %v1786
        %v1788 = vpop.f32.mrb[0].mxu0
        %1789 = vmatprep.mubr.bf16.mxu0 0
        %1790 = vmatmul.mubr.bf16.gmra.mrb[0].mxu0 %v1711
        %v1791 = vpop.f32.mrb[0].mxu0
        %v1792 = vadd.f32 0.0, %v1791
        %v1793 = vpop.f32.mrb[0].mxu0
        %v1794 = vpop.f32.mrb[0].mxu0
        %v1795 = vadd.f32 0.0, %v1794
        %v1796 = vpop.f32.mrb[0].mxu0
        %1797 = vmatprep.mubr.bf16.mxu0 0
        %1798 = vmatmul.mubr.bf16.gmra.mrb[0].mxu0 %v1713
        %v1799 = vpop.f32.mrb[0].mxu0
        %v1800 = vadd.f32 0.0, %v1799
        %v1801 = vpop.f32.mrb[0].mxu0
        %v1802 = vpop.f32.mrb[0].mxu0
        %v1803 = vadd.f32 0.0, %v1802
        %v1804 = vpop.f32.mrb[0].mxu0
        %1805 = vmatprep.mubr.bf16.mxu0 0
        %1806 = vmatmul.mubr.bf16.gmra.mrb[0].mxu0 %v1715
        %v1807 = vpop.f32.mrb[0].mxu0
        %v1808 = vadd.f32 0.0, %v1807
        %v1809 = vpop.f32.mrb[0].mxu0
        %v1810 = vpop.f32.mrb[0].mxu0
        %v1811 = vadd.f32 0.0, %v1810
        %v1812 = vpop.f32.mrb[0].mxu0
        %1813 = vdwg.mxu0
        %v1814 = vld [vmem:[%s769] sm:$0x1]
        %v1815 = vlaneseq
        %v1816 = vshrl.u32 %v1815, 7
        %v1817 = vsub.s32 0, %v1816
        %v1818 = vrot.slane %v1814, %v1817
        %vm1819 = vcmp.eq.s32.totalorder %v1506, %v1818
        %vm1820 = vcmp.eq.s32.totalorder %v1507, %v1818
        %vm1821 = vcmp.eq.s32.totalorder %v1508, %v1818
        %vm1822 = vcmp.eq.s32.totalorder %v1509, %v1818
        %v1823 = vsel %vm1819, 1, 0
        %v1824 = vsel %vm1820, 1, 0
        %v1825 = vsel %vm1821, 1, 0
        %v1826 = vsel %vm1822, 1, 0
        %v1827 = vcvt.s32.f32 %v1823
        %v1828 = vcvt.s32.f32 %v1824
        %v1829 = vcvt.s32.f32 %v1825
        %v1830 = vcvt.s32.f32 %v1826
        %v1831 = vpack.c.bf16 %v1828, %v1827
        %v1832 = vpack.c.bf16 %v1830, %v1829
        %v1833 = vld [vmem:[#allocation4] sm:$0xff]
        %v1834 = vld [vmem:[#allocation4 + $0x8] sm:$0xff]
        %v1835 = vld [vmem:[#allocation4 + $0x10] sm:$0xff]
        %v1836 = vld [vmem:[#allocation4 + $0x18] sm:$0xff]
        %v1838 = vlaneseq
        %v1839 = vshrl.u32 %v1838, 7
        %v1840 = vsub.s32 0, %v1839
        %v1841 = vrot.slane %v1629, %v1840
        %v1843 = vmul.f32 %v1833, %v1841
        %v1844 = vmul.f32 %v1834, %v1841
        %v1845 = vmul.f32 %v1835, %v1841
        %v1846 = vmul.f32 %v1836, %v1841
        %v1847 = vpack.c.bf16 %v1655, %v1653
        %v1848 = vpack.c.bf16 %v1659, %v1657
        %v1849 = vpack.c.bf16 %v1663, %v1661
        %v1850 = vpack.c.bf16 %v1667, %v1665
        %v1851 = vpack.c.bf16 %v1671, %v1669
        %v1852 = vpack.c.bf16 %v1675, %v1673
        %v1853 = vpack.c.bf16 %v1679, %v1677
        %v1854 = vpack.c.bf16 %v1683, %v1681
        %1855 = vmatprep.subr.bf16.mxu0 0
        %1856 = vmatpush1.bf16.msra.mxu0 %v1847
        %1857 = vmatprep.subr.bf16.mxu0 0
        %1858 = vmatpush1.bf16.msra.mxu0 %v1848
        %1859 = vmatprep.subr.bf16.mxu0 0
        %1860 = vmatpush1.bf16.msra.mxu0 %v1849
        %1861 = vmatprep.subr.bf16.mxu0 0
        %1862 = vmatpush1.bf16.msra.mxu0 %v1850
        %1863 = vmatprep.subr.bf16.mxu0 0
        %1864 = vmatpush1.bf16.msra.mxu0 %v1851
        %1865 = vmatprep.subr.bf16.mxu0 0
        %1866 = vmatpush1.bf16.msra.mxu0 %v1852
        %1867 = vmatprep.subr.bf16.mxu0 0
        %1868 = vmatpush1.bf16.msra.mxu0 %v1853
        %1869 = vmatprep.subr.bf16.mxu0 0
        %1870 = vmatpush1.bf16.msra.mxu0 %v1854
        %1871 = vmatprep.subr.bf16.mxu0 0
        %1872 = vmatpush1.bf16.msra.mxu0 0
        %1873 = vmatprep.subr.bf16.mxu0 0
        %1874 = vmatpush1.bf16.msra.mxu0 0
        %1875 = vmatprep.subr.bf16.mxu0 0
        %1876 = vmatpush1.bf16.msra.mxu0 0
        %1877 = vmatprep.subr.bf16.mxu0 0
        %1878 = vmatpush1.bf16.msra.mxu0 0
        %1879 = vmatprep.subr.bf16.mxu0 0
        %1880 = vmatpush1.bf16.msra.mxu0 0
        %1881 = vmatprep.subr.bf16.mxu0 0
        %1882 = vmatpush1.bf16.msra.mxu0 0
        %1883 = vmatprep.subr.bf16.mxu0 0
        %1884 = vmatpush1.bf16.msra.mxu0 0
        %1885 = vmatprep.subr.bf16.mxu0 0
        %1886 = vmatpush1.bf16.msra.mxu0 0
        %1887 = vmatprep.mubr.bf16.mxu0 0
        %1888 = vmatmul.mubr.bf16.gmra.mrb[0].mxu0 %v1831
        %v1889 = vpop.f32.mrb[0].mxu0
        %v1890 = vadd.f32 0.0, %v1889
        %v1891 = vpop.f32.mrb[0].mxu0
        %v1892 = vpop.f32.mrb[0].mxu0
        %v1893 = vadd.f32 0.0, %v1892
        %v1894 = vpop.f32.mrb[0].mxu0
        %1895 = vmatprep.mubr.bf16.mxu0 0
        %1896 = vmatmul.mubr.bf16.gmra.mrb[0].mxu0 %v1832
        %v1897 = vpop.f32.mrb[0].mxu0
        %v1898 = vadd.f32 0.0, %v1897
        %v1899 = vpop.f32.mrb[0].mxu0
        %v1900 = vpop.f32.mrb[0].mxu0
        %v1901 = vadd.f32 0.0, %v1900
        %v1902 = vpop.f32.mrb[0].mxu0
        %1903 = vdwg.mxu0
        %v1904 = vadd.f32 %v1843, %v1890
        %v1905 = vadd.f32 %v1844, %v1893
        %v1906 = vadd.f32 %v1845, %v1898
        %v1907 = vadd.f32 %v1846, %v1901
        %1908 = vst [vmem:[#allocation4] sm:$0xff] %v1904
        %1909 = vst [vmem:[#allocation4 + $0x8] sm:$0xff] %v1905
        %1910 = vst [vmem:[#allocation4 + $0x10] sm:$0xff] %v1906
        %1911 = vst [vmem:[#allocation4 + $0x18] sm:$0xff] %v1907
        %v1912 = vld [vmem:[#allocation5] sm:$0xff]
        %v1913 = vld [vmem:[#allocation5 + $0x8] sm:$0xff]
        %v1914 = vld [vmem:[#allocation5 + $0x10] sm:$0xff]
        %v1915 = vld [vmem:[#allocation5 + $0x18] sm:$0xff]
        %v1916 = vmul.f32 %v1912, %v1841
        %v1917 = vmul.f32 %v1913, %v1841
        %v1918 = vmul.f32 %v1914, %v1841
        %v1919 = vmul.f32 %v1915, %v1841
        %v1920 = vmul.f32 %v1752, %v1653
        %v1921 = vmul.f32 %v1755, %v1655
        %v1922 = vmul.f32 %v1760, %v1657
        %v1923 = vmul.f32 %v1763, %v1659
        %v1924 = vmul.f32 %v1768, %v1661
        %v1925 = vmul.f32 %v1771, %v1663
        %v1926 = vmul.f32 %v1776, %v1665
        %v1927 = vmul.f32 %v1779, %v1667
        %v1928 = vmul.f32 %v1784, %v1669
        %v1929 = vmul.f32 %v1787, %v1671
        %v1930 = vmul.f32 %v1792, %v1673
        %v1931 = vmul.f32 %v1795, %v1675
        %v1932 = vmul.f32 %v1800, %v1677
        %v1933 = vmul.f32 %v1803, %v1679
        %v1934 = vmul.f32 %v1808, %v1681
        %v1935 = vmul.f32 %v1811, %v1683
        %v1936 = vpack.c.bf16 %v1921, %v1920
        %v1937 = vpack.c.bf16 %v1923, %v1922
        %v1938 = vpack.c.bf16 %v1925, %v1924
        %v1939 = vpack.c.bf16 %v1927, %v1926
        %v1940 = vpack.c.bf16 %v1929, %v1928
        %v1941 = vpack.c.bf16 %v1931, %v1930
        %v1942 = vpack.c.bf16 %v1933, %v1932
        %v1943 = vpack.c.bf16 %v1935, %v1934
        %1944 = vmatprep.subr.bf16.mxu0 0
        %1945 = vmatpush1.bf16.msra.mxu0 %v1936
        %1946 = vmatprep.subr.bf16.mxu0 0
        %1947 = vmatpush1.bf16.msra.mxu0 %v1937
        %1948 = vmatprep.subr.bf16.mxu0 0
        %1949 = vmatpush1.bf16.msra.mxu0 %v1938
        %1950 = vmatprep.subr.bf16.mxu0 0
        %1951 = vmatpush1.bf16.msra.mxu0 %v1939
        %1952 = vmatprep.subr.bf16.mxu0 0
        %1953 = vmatpush1.bf16.msra.mxu0 %v1940
        %1954 = vmatprep.subr.bf16.mxu0 0
        %1955 = vmatpush1.bf16.msra.mxu0 %v1941
        %1956 = vmatprep.subr.bf16.mxu0 0
        %1957 = vmatpush1.bf16.msra.mxu0 %v1942
        %1958 = vmatprep.subr.bf16.mxu0 0
        %1959 = vmatpush1.bf16.msra.mxu0 %v1943
        %1960 = vmatprep.subr.bf16.mxu0 0
        %1961 = vmatpush1.bf16.msra.mxu0 0
        %1962 = vmatprep.subr.bf16.mxu0 0
        %1963 = vmatpush1.bf16.msra.mxu0 0
        %1964 = vmatprep.subr.bf16.mxu0 0
        %1965 = vmatpush1.bf16.msra.mxu0 0
        %1966 = vmatprep.subr.bf16.mxu0 0
        %1967 = vmatpush1.bf16.msra.mxu0 0
        %1968 = vmatprep.subr.bf16.mxu0 0
        %1969 = vmatpush1.bf16.msra.mxu0 0
        %1970 = vmatprep.subr.bf16.mxu0 0
        %1971 = vmatpush1.bf16.msra.mxu0 0
        %1972 = vmatprep.subr.bf16.mxu0 0
        %1973 = vmatpush1.bf16.msra.mxu0 0
        %1974 = vmatprep.subr.bf16.mxu0 0
        %1975 = vmatpush1.bf16.msra.mxu0 0
        %1976 = vmatprep.mubr.bf16.mxu0 0
        %1977 = vmatmul.mubr.bf16.gmra.mrb[0].mxu0 %v1831
        %v1978 = vpop.f32.mrb[0].mxu0
        %v1979 = vadd.f32 0.0, %v1978
        %v1980 = vpop.f32.mrb[0].mxu0
        %v1981 = vpop.f32.mrb[0].mxu0
        %v1982 = vadd.f32 0.0, %v1981
        %v1983 = vpop.f32.mrb[0].mxu0
        %1984 = vmatprep.mubr.bf16.mxu0 0
        %1985 = vmatmul.mubr.bf16.gmra.mrb[0].mxu0 %v1832
        %v1986 = vpop.f32.mrb[0].mxu0
        %v1987 = vadd.f32 0.0, %v1986
        %v1988 = vpop.f32.mrb[0].mxu0
        %v1989 = vpop.f32.mrb[0].mxu0
        %v1990 = vadd.f32 0.0, %v1989
        %v1991 = vpop.f32.mrb[0].mxu0
        %1992 = vdwg.mxu0
        %v1993 = vadd.f32 %v1916, %v1979
        %v1994 = vadd.f32 %v1917, %v1982
        %v1995 = vadd.f32 %v1918, %v1987
        %v1996 = vadd.f32 %v1919, %v1990
        %1997 = vst [vmem:[#allocation5] sm:$0xff] %v1993
        %1998 = vst [vmem:[#allocation5 + $0x8] sm:$0xff] %v1994
        %1999 = vst [vmem:[#allocation5 + $0x10] sm:$0xff] %v1995
        %2000 = vst [vmem:[#allocation5 + $0x18] sm:$0xff] %v1996
        %2001 = vst [vmem:[#allocation3] sm:$0x1] %v1626
        %p2002 = scmp.eq.s32.totalorder %s35, 2
        // Predicated region
        $region152: #{tpu_custom_call.1} parent=130 // pred_check
          %p2003 = pneg %p2002
        $region153: #{tpu_custom_call.1} parent=130 // pred_check_branch
          %2005 = sbr.rel (%p2003) target = $region155
        $region154: #{tpu_custom_call.1} parent=130 // pred_region
          %v2006 = vld [vmem:[#allocation4] sm:$0xff]
          %v2007 = vld [vmem:[#allocation4 + $0x8] sm:$0xff]
          %v2008 = vld [vmem:[#allocation4 + $0x10] sm:$0xff]
          %v2009 = vld [vmem:[#allocation4 + $0x18] sm:$0xff]
          %v2010 = vrcp.pop %v2006
          %v2011 = vrcp.pop %v2007
          %v2012 = vrcp.pop %v2008
          %v2013 = vrcp.pop %v2009
          %v2014 = vmul.f32 %v2006, %v2010
          %v2015 = vmul.f32 %v2007, %v2011
          %v2016 = vmul.f32 %v2008, %v2012
          %v2017 = vmul.f32 %v2009, %v2013
          %v2018 = vsub.f32 2.0, %v2014
          %v2019 = vsub.f32 2.0, %v2015
          %v2020 = vsub.f32 2.0, %v2016
          %v2021 = vsub.f32 2.0, %v2017
          %v2022 = vmul.f32 %v2010, %v2018
          %v2023 = vmul.f32 %v2011, %v2019
          %v2024 = vmul.f32 %v2012, %v2020
          %v2025 = vmul.f32 %v2013, %v2021
          %vm2026 = vcmp.gt.f32.partialorder %v2006, 0.0
          %vm2027 = vcmp.gt.f32.partialorder %v2007, 0.0
          %vm2028 = vcmp.gt.f32.partialorder %v2008, 0.0
          %vm2029 = vcmp.gt.f32.partialorder %v2009, 0.0
          %v2030 = vld [vmem:[#allocation5] sm:$0xff]
          %v2031 = vld [vmem:[#allocation5 + $0x8] sm:$0xff]
          %v2032 = vld [vmem:[#allocation5 + $0x10] sm:$0xff]
          %v2033 = vld [vmem:[#allocation5 + $0x18] sm:$0xff]
          %v2034 = vmul.f32 %v2030, %v2022
          %v2035 = vmul.f32 %v2031, %v2023
          %v2036 = vmul.f32 %v2032, %v2024
          %v2037 = vmul.f32 %v2033, %v2025
          %v2038 = vsel %vm2026, %v2034, 0.0
          %v2039 = vsel %vm2027, %v2035, 0.0
          %v2040 = vsel %vm2028, %v2036, 0.0
          %v2041 = vsel %vm2029, %v2037, 0.0
          %2042 = vst [vmem:[%s748] sm:$0xff] %v2038
          %2043 = vst [vmem:[%s748 + $0x8] sm:$0xff] %v2039
          %2044 = vst [vmem:[%s748 + $0x10] sm:$0xff] %v2040
          %2045 = vst [vmem:[%s748 + $0x18] sm:$0xff] %v2041
        $region155: #{tpu_custom_call.1} parent=130 // pred_fallthru
          _
        %s2046 = sand.u32 %s307, 1
        %s2047 = scalar_lea.sflag [#allocation10], %s2046
        %s2048 = sand.u32 %s307, 1
        %s2049 = smul.addr %s2048, 32
        %s2050 = scalar_lea.vmem [#allocation13], %s2049
        // Predicated region
        $region156: #{tpu_custom_call.1} parent=130 // pred_check
          %p2051 = pneg %p317
        $region157: #{tpu_custom_call.1} parent=130 // pred_check_branch
          %2053 = sbr.rel (%p2051) target = $region159
        $region158: #{tpu_custom_call.1} parent=130 // pred_region
          %s2055 = ssub.s32 512, 512
          %2056 = vsyncadd %s2047, %s2055
          %s2057 = smul.addr %s34, 128
          %s2058 = scalar_lea.hbm %s10, %s2057
          %s2059 = sshll.u32 %s2050, 4
          %s2060 = int_to_ptr.vmem [resolvable:$true] %s2059
          %2065 = dma.vmem_to_hbm [thread:$0]  %s2060, 512, %s2058, %s2047, 128, 256, 8
        $region159: #{tpu_custom_call.1} parent=130 // pred_fallthru
          _
      $region131: #{tpu_custom_call.1} parent=5 // pred_fallthru
        _
      %p2066 = scmp.le.s32.totalorder 2, %s25
      // Predicated region
      $region160: #{tpu_custom_call.1} parent=5 // pred_check
        %p2067 = pneg %p2066
      $region161: #{tpu_custom_call.1} parent=5 // pred_check_branch
        %2069 = sbr.rel (%p2067) target = $region163
      $region162: #{tpu_custom_call.1} parent=5 // pred_region
        %s2070 = ssub.s32 %s25, 2
        // Predicated region
        $region164: #{tpu_custom_call.1} parent=162 // pred_check
          %p2071 = pneg %p323
        $region165: #{tpu_custom_call.1} parent=162 // pred_check_branch
          %2073 = sbr.rel (%p2071) target = $region167
        $region166: #{tpu_custom_call.1} parent=162 // pred_region
          %s2074 = sand.u32 %s308, 1
          %s2075 = scalar_lea.sflag [#allocation10], %s2074
          %s2076 = sand.u32 %s308, 1
          %s2077 = smul.addr %s2076, 32
          %s2078 = scalar_lea.vmem [#allocation13], %s2077
          %2079 = dma.done %s2075, 512
        $region167: #{tpu_custom_call.1} parent=162 // pred_fallthru
          _
      $region163: #{tpu_custom_call.1} parent=5 // pred_fallthru
        _
    $region6: #{tpu_custom_call.1} parent=1 // loop_footer
      %s29 = sadd.s32 1, %s25
    $region7: #{tpu_custom_call.1} parent=1 // loop_footer_branch
      %24 = sbr.rel target = $region3
    $region8: #{tpu_custom_call.1} parent=1 // loop_exit
      _
    %2080 = vsyncpa [#allocation9], 1
    %s2081 = scalar_lea.sflag [#allocation9], 1
    %2082 = vsyncpa %s2081, 1
    %2083 = vsyncpa [#allocation12], 1
    %s2084 = scalar_lea.sflag [#allocation12], 1
    %2085 = vsyncpa %s2084, 1
    %2086 = vsyncpa [#allocation10], 1
    %s2087 = scalar_lea.sflag [#allocation10], 1
    %2088 = vsyncpa %s2087, 1

</llo_original>
